<compile_context>
chip_gen: v7x
topology: tpu7x:2x2x1
jax: 0.10.0
libtpu: 0.0.40
codegen_flags: <defaults>
</compile_context>

<pallas_src>
import jax
import jax.numpy as jnp
from jax import lax
from jax.experimental import pallas as pl
from jax.experimental.pallas import tpu as pltpu

# Original / padded hidden sizes of linears1 (+ first linears2 layer width).
H1, H2, H3, H4 = 500, 200, 100, 50
H1P, H2P, H3P, H4P = 512, 256, 128, 64
H5 = 20


def _round_up(x, m):
    return (x + m - 1) // m * m


def _pad2(a, rows, cols, dtype=None):
    """Cast (optionally) and zero-pad a 2-D array to (rows, cols)."""
    if dtype is not None and a.dtype != dtype:
        a = a.astype(dtype)
    r, c = a.shape
    if r == rows and c == cols:
        return a
    return jnp.pad(a, ((0, rows - r), (0, cols - c)))


def _mlp_kernel(snp_ref, cov_ref,
                w1_ref, b1_ref, w2_ref, b2_ref, w3_ref, b3_ref, w4_ref, b4_ref,
                w5a_ref, w6_ref, b6_ref, w7t_ref, b7_ref,
                out_ref, acc_ref):
    f32 = jnp.float32
    k = pl.program_id(1)
    nk = pl.num_programs(1)

    # Layer-1 partial product for this K tile (bf16 operands, f32 accumulate).
    part = jnp.dot(snp_ref[...], w1_ref[...], preferred_element_type=f32)

    @pl.when(k == 0)
    def _():
        acc_ref[...] = part          # assign (no zero-fill + RMW on step 0)

    @pl.when(k > 0)
    def _():
        acc_ref[...] += part

    @pl.when(k == nk - 1)
    def _():
        # --- remainder of linears1 (weights are VMEM-resident) ---
        h = jnp.maximum(acc_ref[...] + b1_ref[...], 0.0)                 # (TB,512)
        h = jnp.dot(h.astype(w2_ref.dtype), w2_ref[...],
                    preferred_element_type=f32) + b2_ref[...]
        h = jnp.maximum(h, 0.0)                                          # (TB,256)
        h = jnp.dot(h, w3_ref[...], preferred_element_type=f32) + b3_ref[...]
        h = jnp.maximum(h, 0.0)                                          # (TB,128)
        y1 = (jnp.dot(h, w4_ref[...], preferred_element_type=f32)
              + b4_ref[...])                                             # (TB,64)

        # --- linears2 on concat([y1, cov2], 1), concat folded away ---
        # cov_ref already holds cov2 @ w5[50:] + b5 (computed host-side).
        z = jnp.dot(y1, w5a_ref[...], preferred_element_type=f32) + cov_ref[...]
        z = jnp.maximum(z, 0.0)                                          # (TB,20)
        z = jnp.dot(z, w6_ref[...], preferred_element_type=f32) + b6_ref[...]
        z = jnp.maximum(z, 0.0)                                          # (TB,10)

        # Final 10 -> 1 layer, transposed so the output row is lane dense:
        # (1,10) contracted with (TB,10) on the last dim -> (1, TB).
        row = lax.dot_general(w7t_ref[...], z,
                              dimension_numbers=(((1,), (1,)), ((), ())),
                              preferred_element_type=f32)
        out_ref[...] = row + b7_ref[...]


def deep_ecg_addcov2(snp_x, cov2_x, params, *, tb=1024, tk=1024,
                     compute_dtype=jnp.bfloat16):
    """snp_x: (B, input_dim), cov2_x: (B, 2) -> (B, 1) float32."""
    B, D = snp_x.shape
    (w1, b1, w2, b2, w3, b3, w4, b4, w5, b5, w6, b6, w7, b7) = params

    # ---- tile selection -----------------------------------------------------
    B128 = _round_up(B, 128)
    TB = min(_round_up(tb, 128), B128)
    # Ensure >= 2 batch tiles when possible so the "parallel" batch axis can
    # shard across v7x's two TensorCores (no-op on single-tile tiny batches).
    if TB >= B128 and B128 >= 256:
        TB = _round_up(B128 // 2, 128)
    Bp = _round_up(B, TB)

    D128 = _round_up(D, 128)
    TK = min(_round_up(tk, 128), D128)
    # Prefer a TK that divides D exactly (skips K-padding of snp_x entirely).
    if D % 128 == 0 and D % TK != 0:
        for t in range(TK, 0, -128):
            if D % t == 0:
                TK = t
                break
    Kp = _round_up(D, TK)

    # ---- host-side weight prep (zero-pad hidden dims to 128 multiples) -----
    w1_p = _pad2(w1, Kp, H1P, compute_dtype)
    b1_p = _pad2(b1, 1, H1P)
    w2_p = _pad2(w2, H1P, H2P, compute_dtype)
    b2_p = _pad2(b2, 1, H2P)
    w3_p = _pad2(w3, H2P, H3P)
    b3_p = _pad2(b3, 1, H3P)
    w4_p = _pad2(w4, H3P, H4P)
    b4_p = _pad2(b4, 1, H4P)
    w5a_p = _pad2(w5[:H4, :], H4P, H5)     # multiplies y1 (padded rows = 0)
    w7t = w7.T                             # (1, 10)

    # Covariate part of the first linears2 layer, precomputed host-side
    # (folds b5 in): (B,2) @ (2,20) + (1,20) -> (B,20).
    cov_term = cov2_x.astype(jnp.float32) @ w5[H4:, :] + b5
    cov_p = cov_term if Bp == B else jnp.pad(cov_term, ((0, Bp - B), (0, 0)))

    # snp_x: cast / pad only when actually needed (avoid an extra HBM pass).
    snp_p = snp_x if snp_x.dtype == compute_dtype else snp_x.astype(compute_dtype)
    if Bp != B or Kp != D:
        snp_p = jnp.pad(snp_p, ((0, Bp - B), (0, Kp - D)))

    args = (snp_p, cov_p,
            w1_p, b1_p, w2_p, b2_p, w3_p, b3_p, w4_p, b4_p,
            w5a_p, w6, b6, w7t, b7)

    def _const_spec(arr):
        # Block index never changes -> the buffer stays VMEM-resident and is
        # only DMA'd once per core.
        nd = arr.ndim
        return pl.BlockSpec(arr.shape, lambda i, k: (0,) * nd)

    in_specs = [
        pl.BlockSpec((TB, TK), lambda i, k: (i, k)),     # snp tile (streamed)
        pl.BlockSpec((TB, H5), lambda i, k: (i, 0)),     # cov term (streamed)
        pl.BlockSpec((TK, H1P), lambda i, k: (k, 0)),    # w1 K-tile
    ] + [_const_spec(a) for a in args[3:]]               # resident weights/biases

    out_specs = pl.BlockSpec((1, TB), lambda i, k: (0, i))

    grid = (Bp // TB, Kp // TK)
    n_btiles = Bp // TB
    isz = jnp.dtype(compute_dtype).itemsize

    flops = 2 * Bp * (Kp * H1P + H1P * H2P + H2P * H3P + H3P * H4P
                      + H4P * H5 + H5 * 10 + 10 * 1)
    resident_bytes = sum(int(a.size) * a.dtype.itemsize for a in args[3:])
    bytes_accessed = int(Bp * Kp * isz                 # snp, streamed once
                         + n_btiles * Kp * H1P * isz   # w1, re-read per batch tile
                         + Bp * H5 * 4                 # cov term
                         + resident_bytes
                         + Bp * 4)                     # output

    out = pl.pallas_call(
        _mlp_kernel,
        out_shape=jax.ShapeDtypeStruct((1, Bp), jnp.float32),
        grid_spec=pltpu.PrefetchScalarGridSpec(
            num_scalar_prefetch=0,
            grid=grid,
            in_specs=in_specs,
            out_specs=out_specs,
            scratch_shapes=[pltpu.VMEM((TB, H1P), jnp.float32)],
        ),
        compiler_params=pltpu.CompilerParams(
            dimension_semantics=("parallel", "arbitrary"),
            # 48 MiB: fits default tiles (~10 MiB) and TB/TK up to 2048 while
            # staying inside v7x's 64 MiB physical VMEM (v5e/v6e have 128 MiB).
            vmem_limit_bytes=48 * 1024 * 1024,
        ),
        cost_estimate=pl.CostEstimate(
            flops=flops, transcendentals=0, bytes_accessed=bytes_accessed),
    )(*args)

    return out[0, :B].reshape(B, 1)


def init_params(key, input_dim):
    """Deterministic parameter init; weights stored as (in, out)."""
    dims1 = [(input_dim, 500), (500, 200), (200, 100), (100, 50)]
    dims2 = [(52, 20), (20, 10), (10, 1)]
    params = []
    for (din, dout) in dims1 + dims2:
        key, kw, kb = jax.random.split(key, 3)
        scale = 1.0 / jnp.sqrt(jnp.float32(din))
        w = jax.random.uniform(kw, (din, dout), jnp.float32, -scale, scale)
        b = jax.random.uniform(kb, (1, dout), jnp.float32, -scale, scale)
        params.append(w)
        params.append(b)
    return tuple(params)


def reference_forward(snp_x, cov2_x, params):
    """Plain-JAX reference matching the PyTorch forward (eval mode)."""
    (w1, b1, w2, b2, w3, b3, w4, b4, w5, b5, w6, b6, w7, b7) = params
    h = jnp.maximum(snp_x @ w1 + b1, 0.0)
    h = jnp.maximum(h @ w2 + b2, 0.0)
    h = jnp.maximum(h @ w3 + b3, 0.0)
    y1 = h @ w4 + b4
    x2 = jnp.concatenate([y1, cov2_x], axis=1)
    z = jnp.maximum(x2 @ w5 + b5, 0.0)
    z = jnp.maximum(z @ w6 + b6, 0.0)
    return z @ w7 + b7


if __name__ == "__main__":
    key = jax.random.PRNGKey(0)

    # --- small test (single tile along batch and K) ---
    B, INPUT_DIM = 8, 16
    k_params, k_snp, k_cov = jax.random.split(key, 3)
    params = init_params(k_params, INPUT_DIM)
    snp_x = jax.random.normal(k_snp, (B, INPUT_DIM), jnp.float32)
    cov2_x = jax.random.normal(k_cov, (B, 2), jnp.float32)
    ref = reference_forward(snp_x, cov2_x, params)

    # f32 compute path: tight check.
    out_f32 = jax.block_until_ready(
        deep_ecg_addcov2(snp_x, cov2_x, params, compute_dtype=jnp.float32))
    assert out_f32.shape == (B, 1)
    assert jnp.allclose(out_f32, ref, atol=1e-4, rtol=1e-4), (out_f32, ref)

    # bf16 compute path (default): matmul operands are bf16 -> looser tolerance.
    out_bf16 = jax.block_until_ready(deep_ecg_addcov2(snp_x, cov2_x, params))
    assert out_bf16.shape == (B, 1)
    assert jnp.allclose(out_bf16, ref, atol=3e-2, rtol=3e-2), (out_bf16, ref)

    # --- multi-tile test: exercises batch tiling, K tiling, padding, pl.when ---
    B2, D2 = 300, 700
    k_params2, k_snp2, k_cov2 = jax.random.split(jax.random.PRNGKey(1), 3)
    params2 = init_params(k_params2, D2)
    snp2 = jax.random.normal(k_snp2, (B2, D2), jnp.float32)
    cov2 = jax.random.normal(k_cov2, (B2, 2), jnp.float32)
    ref2 = reference_forward(snp2, cov2, params2)
    out2 = jax.block_until_ready(
        deep_ecg_addcov2(snp2, cov2, params2, tb=128, tk=128,
                         compute_dtype=jnp.float32))
    assert out2.shape == (B2, 1)
    assert jnp.allclose(out2, ref2, atol=1e-2, rtol=1e-2), (out2, ref2)

    # --- larger-batch test with default (large) tiles: >=2 batch tiles path ---
    B3, D3 = 400, 384
    k_params3, k_snp3, k_cov3 = jax.random.split(jax.random.PRNGKey(2), 3)
    params3 = init_params(k_params3, D3)
    snp3 = jax.random.normal(k_snp3, (B3, D3), jnp.float32)
    cov3 = jax.random.normal(k_cov3, (B3, 2), jnp.float32)
    ref3 = reference_forward(snp3, cov3, params3)
    out3 = jax.block_until_ready(
        deep_ecg_addcov2(snp3, cov3, params3, compute_dtype=jnp.float32))
    assert out3.shape == (B3, 1)
    assert jnp.allclose(out3, ref3, atol=1e-2, rtol=1e-2), (out3, ref3)

    print("KERNEL_OK")
</pallas_src>

<mosaic_0001>
module attributes {stable_mosaic.version = 11 : i64} {
  func.func @_mlp_kernel(%arg0: i32, %arg1: i32, %arg2: memref<128x128xf32, #tpu.memory_space<vmem>>, %arg3: memref<128x20xf32, #tpu.memory_space<vmem>>, %arg4: memref<128x512xf32, #tpu.memory_space<vmem>>, %arg5: memref<1x512xf32, #tpu.memory_space<vmem>>, %arg6: memref<512x256xf32, #tpu.memory_space<vmem>>, %arg7: memref<1x256xf32, #tpu.memory_space<vmem>>, %arg8: memref<256x128xf32, #tpu.memory_space<vmem>>, %arg9: memref<1x128xf32, #tpu.memory_space<vmem>>, %arg10: memref<128x64xf32, #tpu.memory_space<vmem>>, %arg11: memref<1x64xf32, #tpu.memory_space<vmem>>, %arg12: memref<64x20xf32, #tpu.memory_space<vmem>>, %arg13: memref<20x10xf32, #tpu.memory_space<vmem>>, %arg14: memref<1x10xf32, #tpu.memory_space<vmem>>, %arg15: memref<1x10xf32, #tpu.memory_space<vmem>>, %arg16: memref<1x1xf32, #tpu.memory_space<vmem>>, %arg17: memref<1x128xf32, #tpu.memory_space<vmem>>, %arg18: memref<128x512xf32, #tpu.memory_space<vmem>>) attributes {dimension_semantics = [#tpu.dimension_semantics<parallel>, #tpu.dimension_semantics<arbitrary>], iteration_bounds = array<i64: 1, 1>, scalar_prefetch = 0 : i64, scratch_operands = 1 : i64, tpu.core_type = #tpu.core_type<tc>, window_params = [{transform_indices = @transform_0, window_bounds = array<i64: 128, 128>}, {transform_indices = @transform_1, window_bounds = array<i64: 128, 20>}, {transform_indices = @transform_2, window_bounds = array<i64: 128, 512>}, {pipeline_mode = #tpu.pipeline_mode<synchronous>, transform_indices = @transform_3, window_bounds = array<i64: 1, 512>}, {pipeline_mode = #tpu.pipeline_mode<synchronous>, transform_indices = @transform_4, window_bounds = array<i64: 512, 256>}, {pipeline_mode = #tpu.pipeline_mode<synchronous>, transform_indices = @transform_5, window_bounds = array<i64: 1, 256>}, {pipeline_mode = #tpu.pipeline_mode<synchronous>, transform_indices = @transform_6, window_bounds = array<i64: 256, 128>}, {pipeline_mode = #tpu.pipeline_mode<synchronous>, transform_indices = @transform_7, window_bounds = array<i64: 1, 128>}, {pipeline_mode = #tpu.pipeline_mode<synchronous>, transform_indices = @transform_8, window_bounds = array<i64: 128, 64>}, {pipeline_mode = #tpu.pipeline_mode<synchronous>, transform_indices = @transform_9, window_bounds = array<i64: 1, 64>}, {pipeline_mode = #tpu.pipeline_mode<synchronous>, transform_indices = @transform_10, window_bounds = array<i64: 64, 20>}, {pipeline_mode = #tpu.pipeline_mode<synchronous>, transform_indices = @transform_11, window_bounds = array<i64: 20, 10>}, {pipeline_mode = #tpu.pipeline_mode<synchronous>, transform_indices = @transform_12, window_bounds = array<i64: 1, 10>}, {pipeline_mode = #tpu.pipeline_mode<synchronous>, transform_indices = @transform_13, window_bounds = array<i64: 1, 10>}, {pipeline_mode = #tpu.pipeline_mode<synchronous>, transform_indices = @transform_14, window_bounds = array<i64: 1, 1>}, {transform_indices = @transform_15, window_bounds = array<i64: 1, 128>}]} {
    %c0 = arith.constant 0 : index
    %c0_0 = arith.constant 0 : index
    %0 = vector.load %arg2[%c0, %c0_0] : memref<128x128xf32, #tpu.memory_space<vmem>>, vector<128x128xf32>
    %c0_1 = arith.constant 0 : index
    %c0_2 = arith.constant 0 : index
    %1 = vector.load %arg4[%c0_1, %c0_2] : memref<128x512xf32, #tpu.memory_space<vmem>>, vector<128x512xf32>
    %cst = arith.constant dense<0.000000e+00> : vector<128x512xf32>
    %2 = tpu.matmul %0, %1, %cst {dimension_numbers = #tpu.dot_dimension_numbers<[1], [0], [0], [1], [0, 0, 1, 1], [], []>} : vector<128x128xf32>, vector<128x512xf32>, vector<128x512xf32> -> vector<128x512xf32>
    %c0_i32 = arith.constant 0 : i32
    %3 = arith.cmpi eq, %arg1, %c0_i32 : i32
    %4 = arith.extui %3 : i1 to i32
    %c0_i32_3 = arith.constant 0 : i32
    %5 = arith.cmpi ne, %4, %c0_i32_3 : i32
    scf.if %5 {
      %c0_8 = arith.constant 0 : index
      %c0_9 = arith.constant 0 : index
      %12 = vector.load %arg18[%c0_8, %c0_9] : memref<128x512xf32, #tpu.memory_space<vmem>>, vector<128x512xf32>
      tpu.vector_store %arg18[%c0_8, %c0_9], %2 {strides = array<i32>} : memref<128x512xf32, #tpu.memory_space<vmem>>, vector<128x512xf32>,
    } else {
    }
    %c0_i32_4 = arith.constant 0 : i32
    %6 = arith.cmpi sgt, %arg1, %c0_i32_4 : i32
    %7 = arith.extui %6 : i1 to i32
    %c0_i32_5 = arith.constant 0 : i32
    %8 = arith.cmpi ne, %7, %c0_i32_5 : i32
    scf.if %8 {
      %c0_8 = arith.constant 0 : index
      %c0_9 = arith.constant 0 : index
      %12 = vector.load %arg18[%c0_8, %c0_9] : memref<128x512xf32, #tpu.memory_space<vmem>>, vector<128x512xf32>
      %13 = arith.addf %12, %2 : vector<128x512xf32>
      %c0_10 = arith.constant 0 : index
      %c0_11 = arith.constant 0 : index
      %14 = vector.load %arg18[%c0_10, %c0_11] : memref<128x512xf32, #tpu.memory_space<vmem>>, vector<128x512xf32>
      tpu.vector_store %arg18[%c0_10, %c0_11], %13 {strides = array<i32>} : memref<128x512xf32, #tpu.memory_space<vmem>>, vector<128x512xf32>,
    } else {
    }
    %c0_i32_6 = arith.constant 0 : i32
    %9 = arith.cmpi eq, %arg1, %c0_i32_6 : i32
    %10 = arith.extui %9 : i1 to i32
    %c0_i32_7 = arith.constant 0 : i32
    %11 = arith.cmpi ne, %10, %c0_i32_7 : i32
    scf.if %11 {
      %c0_8 = arith.constant 0 : index
      %c0_9 = arith.constant 0 : index
      %12 = vector.load %arg18[%c0_8, %c0_9] : memref<128x512xf32, #tpu.memory_space<vmem>>, vector<128x512xf32>
      %c0_10 = arith.constant 0 : index
      %c0_11 = arith.constant 0 : index
      %13 = vector.load %arg5[%c0_10, %c0_11] : memref<1x512xf32, #tpu.memory_space<vmem>>, vector<1x512xf32>
      %14 = vector.broadcast %13 : vector<1x512xf32> to vector<128x512xf32>
      %15 = arith.addf %12, %14 : vector<128x512xf32>
      %cst_12 = arith.constant 0.000000e+00 : f32
      %16 = vector.broadcast %cst_12 : f32 to vector<128x512xf32>
      %17 = arith.maximumf %15, %16 : vector<128x512xf32>
      %c0_13 = arith.constant 0 : index
      %c0_14 = arith.constant 0 : index
      %18 = vector.load %arg6[%c0_13, %c0_14] : memref<512x256xf32, #tpu.memory_space<vmem>>, vector<512x256xf32>
      %cst_15 = arith.constant dense<0.000000e+00> : vector<128x256xf32>
      %19 = tpu.matmul %17, %18, %cst_15 {dimension_numbers = #tpu.dot_dimension_numbers<[1], [0], [0], [1], [0, 0, 1, 1], [], []>} : vector<128x512xf32>, vector<512x256xf32>, vector<128x256xf32> -> vector<128x256xf32>
      %c0_16 = arith.constant 0 : index
      %c0_17 = arith.constant 0 : index
      %20 = vector.load %arg7[%c0_16, %c0_17] : memref<1x256xf32, #tpu.memory_space<vmem>>, vector<1x256xf32>
      %21 = vector.broadcast %20 : vector<1x256xf32> to vector<128x256xf32>
      %22 = arith.addf %19, %21 : vector<128x256xf32>
      %cst_18 = arith.constant 0.000000e+00 : f32
      %23 = vector.broadcast %cst_18 : f32 to vector<128x256xf32>
      %24 = arith.maximumf %22, %23 : vector<128x256xf32>
      %c0_19 = arith.constant 0 : index
      %c0_20 = arith.constant 0 : index
      %25 = vector.load %arg8[%c0_19, %c0_20] : memref<256x128xf32, #tpu.memory_space<vmem>>, vector<256x128xf32>
      %cst_21 = arith.constant dense<0.000000e+00> : vector<128x128xf32>
      %26 = tpu.matmul %24, %25, %cst_21 {dimension_numbers = #tpu.dot_dimension_numbers<[1], [0], [0], [1], [0, 0, 1, 1], [], []>} : vector<128x256xf32>, vector<256x128xf32>, vector<128x128xf32> -> vector<128x128xf32>
      %c0_22 = arith.constant 0 : index
      %c0_23 = arith.constant 0 : index
      %27 = vector.load %arg9[%c0_22, %c0_23] : memref<1x128xf32, #tpu.memory_space<vmem>>, vector<1x128xf32>
      %28 = vector.broadcast %27 : vector<1x128xf32> to vector<128x128xf32>
      %29 = arith.addf %26, %28 : vector<128x128xf32>
      %cst_24 = arith.constant 0.000000e+00 : f32
      %30 = vector.broadcast %cst_24 : f32 to vector<128x128xf32>
      %31 = arith.maximumf %29, %30 : vector<128x128xf32>
      %c0_25 = arith.constant 0 : index
      %c0_26 = arith.constant 0 : index
      %32 = vector.load %arg10[%c0_25, %c0_26] : memref<128x64xf32, #tpu.memory_space<vmem>>, vector<128x64xf32>
      %cst_27 = arith.constant dense<0.000000e+00> : vector<128x64xf32>
      %33 = tpu.matmul %31, %32, %cst_27 {dimension_numbers = #tpu.dot_dimension_numbers<[1], [0], [0], [1], [0, 0, 1, 1], [], []>} : vector<128x128xf32>, vector<128x64xf32>, vector<128x64xf32> -> vector<128x64xf32>
      %c0_28 = arith.constant 0 : index
      %c0_29 = arith.constant 0 : index
      %34 = vector.load %arg11[%c0_28, %c0_29] : memref<1x64xf32, #tpu.memory_space<vmem>>, vector<1x64xf32>
      %35 = vector.broadcast %34 : vector<1x64xf32> to vector<128x64xf32>
      %36 = arith.addf %33, %35 : vector<128x64xf32>
      %c0_30 = arith.constant 0 : index
      %c0_31 = arith.constant 0 : index
      %37 = vector.load %arg12[%c0_30, %c0_31] : memref<64x20xf32, #tpu.memory_space<vmem>>, vector<64x20xf32>
      %cst_32 = arith.constant dense<0.000000e+00> : vector<128x20xf32>
      %38 = tpu.matmul %36, %37, %cst_32 {dimension_numbers = #tpu.dot_dimension_numbers<[1], [0], [0], [1], [0, 0, 1, 1], [], []>} : vector<128x64xf32>, vector<64x20xf32>, vector<128x20xf32> -> vector<128x20xf32>
      %c0_33 = arith.constant 0 : index
      %c0_34 = arith.constant 0 : index
      %39 = vector.load %arg3[%c0_33, %c0_34] : memref<128x20xf32, #tpu.memory_space<vmem>>, vector<128x20xf32>
      %40 = arith.addf %38, %39 : vector<128x20xf32>
      %cst_35 = arith.constant 0.000000e+00 : f32
      %41 = vector.broadcast %cst_35 : f32 to vector<128x20xf32>
      %42 = arith.maximumf %40, %41 : vector<128x20xf32>
      %c0_36 = arith.constant 0 : index
      %c0_37 = arith.constant 0 : index
      %43 = vector.load %arg13[%c0_36, %c0_37] : memref<20x10xf32, #tpu.memory_space<vmem>>, vector<20x10xf32>
      %cst_38 = arith.constant dense<0.000000e+00> : vector<128x10xf32>
      %44 = tpu.matmul %42, %43, %cst_38 {dimension_numbers = #tpu.dot_dimension_numbers<[1], [0], [0], [1], [0, 0, 1, 1], [], []>} : vector<128x20xf32>, vector<20x10xf32>, vector<128x10xf32> -> vector<128x10xf32>
      %c0_39 = arith.constant 0 : index
      %c0_40 = arith.constant 0 : index
      %45 = vector.load %arg14[%c0_39, %c0_40] : memref<1x10xf32, #tpu.memory_space<vmem>>, vector<1x10xf32>
      %46 = vector.broadcast %45 : vector<1x10xf32> to vector<128x10xf32>
      %47 = arith.addf %44, %46 : vector<128x10xf32>
      %cst_41 = arith.constant 0.000000e+00 : f32
      %48 = vector.broadcast %cst_41 : f32 to vector<128x10xf32>
      %49 = arith.maximumf %47, %48 : vector<128x10xf32>
      %c0_42 = arith.constant 0 : index
      %c0_43 = arith.constant 0 : index
      %50 = vector.load %arg15[%c0_42, %c0_43] : memref<1x10xf32, #tpu.memory_space<vmem>>, vector<1x10xf32>
      %cst_44 = arith.constant dense<0.000000e+00> : vector<1x128xf32>
      %51 = tpu.matmul %50, %49, %cst_44 {dimension_numbers = #tpu.dot_dimension_numbers<[1], [1], [0], [0], [0, 0, 1, 0], [], []>} : vector<1x10xf32>, vector<128x10xf32>, vector<1x128xf32> -> vector<1x128xf32>
      %c0_45 = arith.constant 0 : index
      %c0_46 = arith.constant 0 : index
      %52 = vector.load %arg16[%c0_45, %c0_46] : memref<1x1xf32, #tpu.memory_space<vmem>>, vector<1x1xf32>
      %53 = vector.broadcast %52 : vector<1x1xf32> to vector<1x128xf32>
      %54 = arith.addf %51, %53 : vector<1x128xf32>
      %c0_47 = arith.constant 0 : index
      %c0_48 = arith.constant 0 : index
      %55 = vector.load %arg17[%c0_47, %c0_48] : memref<1x128xf32, #tpu.memory_space<vmem>>, vector<1x128xf32>
      tpu.vector_store %arg17[%c0_47, %c0_48], %54 {strides = array<i32>} : memref<1x128xf32, #tpu.memory_space<vmem>>, vector<1x128xf32>,
    } else {
    }
    return
  }
  func.func @transform_0(%arg0: i32, %arg1: i32) -> (i32, i32) {
    %c0_i32 = arith.constant 0 : i32
    return %arg0, %arg1 : i32, i32
  }
  func.func @transform_1(%arg0: i32, %arg1: i32) -> (i32, i32) {
    %c0_i32 = arith.constant 0 : i32
    %c0_i32_0 = arith.constant 0 : i32
    return %arg0, %c0_i32 : i32, i32
  }
  func.func @transform_2(%arg0: i32, %arg1: i32) -> (i32, i32) {
    %c0_i32 = arith.constant 0 : i32
    %c0_i32_0 = arith.constant 0 : i32
    return %arg1, %c0_i32 : i32, i32
  }
  func.func @transform_3(%arg0: i32, %arg1: i32) -> (i32, i32) {
    %c0_i32 = arith.constant 0 : i32
    %c0_i32_0 = arith.constant 0 : i32
    %c0_i32_1 = arith.constant 0 : i32
    return %c0_i32, %c0_i32_0 : i32, i32
  }
  func.func @transform_4(%arg0: i32, %arg1: i32) -> (i32, i32) {
    %c0_i32 = arith.constant 0 : i32
    %c0_i32_0 = arith.constant 0 : i32
    %c0_i32_1 = arith.constant 0 : i32
    return %c0_i32, %c0_i32_0 : i32, i32
  }
  func.func @transform_5(%arg0: i32, %arg1: i32) -> (i32, i32) {
    %c0_i32 = arith.constant 0 : i32
    %c0_i32_0 = arith.constant 0 : i32
    %c0_i32_1 = arith.constant 0 : i32
    return %c0_i32, %c0_i32_0 : i32, i32
  }
  func.func @transform_6(%arg0: i32, %arg1: i32) -> (i32, i32) {
    %c0_i32 = arith.constant 0 : i32
    %c0_i32_0 = arith.constant 0 : i32
    %c0_i32_1 = arith.constant 0 : i32
    return %c0_i32, %c0_i32_0 : i32, i32
  }
  func.func @transform_7(%arg0: i32, %arg1: i32) -> (i32, i32) {
    %c0_i32 = arith.constant 0 : i32
    %c0_i32_0 = arith.constant 0 : i32
    %c0_i32_1 = arith.constant 0 : i32
    return %c0_i32, %c0_i32_0 : i32, i32
  }
  func.func @transform_8(%arg0: i32, %arg1: i32) -> (i32, i32) {
    %c0_i32 = arith.constant 0 : i32
    %c0_i32_0 = arith.constant 0 : i32
    %c0_i32_1 = arith.constant 0 : i32
    return %c0_i32, %c0_i32_0 : i32, i32
  }
  func.func @transform_9(%arg0: i32, %arg1: i32) -> (i32, i32) {
    %c0_i32 = arith.constant 0 : i32
    %c0_i32_0 = arith.constant 0 : i32
    %c0_i32_1 = arith.constant 0 : i32
    return %c0_i32, %c0_i32_0 : i32, i32
  }
  func.func @transform_10(%arg0: i32, %arg1: i32) -> (i32, i32) {
    %c0_i32 = arith.constant 0 : i32
    %c0_i32_0 = arith.constant 0 : i32
    %c0_i32_1 = arith.constant 0 : i32
    return %c0_i32, %c0_i32_0 : i32, i32
  }
  func.func @transform_11(%arg0: i32, %arg1: i32) -> (i32, i32) {
    %c0_i32 = arith.constant 0 : i32
    %c0_i32_0 = arith.constant 0 : i32
    %c0_i32_1 = arith.constant 0 : i32
    return %c0_i32, %c0_i32_0 : i32, i32
  }
  func.func @transform_12(%arg0: i32, %arg1: i32) -> (i32, i32) {
    %c0_i32 = arith.constant 0 : i32
    %c0_i32_0 = arith.constant 0 : i32
    %c0_i32_1 = arith.constant 0 : i32
    return %c0_i32, %c0_i32_0 : i32, i32
  }
  func.func @transform_13(%arg0: i32, %arg1: i32) -> (i32, i32) {
    %c0_i32 = arith.constant 0 : i32
    %c0_i32_0 = arith.constant 0 : i32
    %c0_i32_1 = arith.constant 0 : i32
    return %c0_i32, %c0_i32_0 : i32, i32
  }
  func.func @transform_14(%arg0: i32, %arg1: i32) -> (i32, i32) {
    %c0_i32 = arith.constant 0 : i32
    %c0_i32_0 = arith.constant 0 : i32
    %c0_i32_1 = arith.constant 0 : i32
    return %c0_i32, %c0_i32_0 : i32, i32
  }
  func.func @transform_15(%arg0: i32, %arg1: i32) -> (i32, i32) {
    %c0_i32 = arith.constant 0 : i32
    %c0_i32_0 = arith.constant 0 : i32
    return %c0_i32, %arg0 : i32, i32
  }
}

</mosaic_0001>

<llo_original>
// kernel: tpu_custom_call.1
$region0: #{tpu_custom_call.1}
  #allocation0 [shape = 'u32[]', space=smem, size = 0x4, offset = 0x4, fixed_abs, tag = 'smem constant byte address 0x4 - core index']
  #allocation1 [shape = 'u32[144,128]{1,0:T(1,128)}', space=vmem, size = 0x12000, scoped, tag = 'internal scratch']
  #allocation2 [shape = 'f32[128,512]{1,0:T(8,128)}', space=vmem, size = 0x40000, scoped, tag = 'scratch operand']
  #allocation3 [shape = 'f32[1,1]{1,0:T(1,128)S(1)}', space=vmem, size = 0x200, scoped, tag = 'scoped memory for tpu_custom_call.1']
  %s0 = inlined_call_operand.vmem [shape: f32[128,128], index: 0, kind: input, shape index: {}]
  %s1 = inlined_call_operand.vmem [shape: f32[128,20], index: 1, kind: input, shape index: {}]
  %s2 = inlined_call_operand.hbm [shape: f32[128,512], index: 2, kind: input, shape index: {}]
  %s3 = inlined_call_operand.vmem [shape: f32[1,512], index: 3, kind: input, shape index: {}]
  %s4 = inlined_call_operand.hbm [shape: f32[512,256], index: 4, kind: input, shape index: {}]
  %s5 = inlined_call_operand.vmem [shape: f32[1,256], index: 5, kind: input, shape index: {}]
  %s6 = inlined_call_operand.vmem [shape: f32[256,128], index: 6, kind: input, shape index: {}]
  %s7 = inlined_call_operand.vmem [shape: f32[1,128], index: 7, kind: input, shape index: {}]
  %s8 = inlined_call_operand.vmem [shape: f32[128,64], index: 8, kind: input, shape index: {}]
  %s9 = inlined_call_operand.vmem [shape: f32[1,64], index: 9, kind: input, shape index: {}]
  %s10 = inlined_call_operand.vmem [shape: f32[64,20], index: 10, kind: input, shape index: {}]
  %s11 = inlined_call_operand.vmem [shape: f32[20,10], index: 11, kind: input, shape index: {}]
  %s12 = inlined_call_operand.vmem [shape: f32[1,10], index: 12, kind: input, shape index: {}]
  %s13 = inlined_call_operand.vmem [shape: f32[1,10], index: 13, kind: input, shape index: {}]
  %s14 = inlined_call_operand.<no memory space> [shape: f32[1,1], index: 14, kind: input, shape index: {}]
  %s15 = inlined_call_operand.hbm [shape: f32[1,128], index: 15, kind: output, shape index: {}]
  %s16 = sld [smem:[#allocation0]]
  $region90: #{tpu_custom_call.1} parent=0
    _
  %s18 = ssub.s32 1, %s16
  %s19 = scalar_select 0, %s18, %s16
  %v20 = vstv %s14
  %21 = vst [vmem:[#allocation3] sm:$0x1] %v20
  $region1: #{tpu_custom_call.1} parent=0
    #allocation4 [shape = 'u8[262144]{0}', space=vmem, size = 0x40000, scoped, tag = 'input window, operand 2, single buffered']
    #allocation5 [shape = 's32[1]{0}', space=sflag, size = 0x4, scoped, tag = 'scoped memory for tpu_custom_call.1']
    #allocation6 [shape = 's32[1]{0}', space=sflag, size = 0x4, scoped, tag = 'scoped memory for tpu_custom_call.1']
    #allocation7 [shape = 'u8[524288]{0}', space=vmem, size = 0x80000, scoped, tag = 'input window, operand 4, single buffered']
    #allocation8 [shape = 's32[1]{0}', space=sflag, size = 0x4, scoped, tag = 'scoped memory for tpu_custom_call.1']
    #allocation9 [shape = 'u8[512]{0}', space=vmem, size = 0x400, scoped, tag = 'output window, operand 0, single buffered']
    %22 = vsyncpa [#allocation5], 0
    %23 = vsyncpa [#allocation8], 0
    %24 = vsyncpa [#allocation6], 0
    // Predicated region
    $region2: #{tpu_custom_call.1} parent=1 // pred_check
      _
    $region3: #{tpu_custom_call.1} parent=1 // pred_check_branch
      %26 = sbr.rel (0) target = $region5
    $region4: #{tpu_custom_call.1} parent=1 // pred_region
      _
    $region5: #{tpu_custom_call.1} parent=1 // pred_fallthru
      _
    // Predicated region
    $region6: #{tpu_custom_call.1} parent=1 // pred_check
      _
    $region7: #{tpu_custom_call.1} parent=1 // pred_check_branch
      %28 = sbr.rel (0) target = $region9
    $region8: #{tpu_custom_call.1} parent=1 // pred_region
      _
    $region9: #{tpu_custom_call.1} parent=1 // pred_fallthru
      _
    // Predicated region
    $region10: #{tpu_custom_call.1} parent=1 // pred_check
      _
    $region11: #{tpu_custom_call.1} parent=1 // pred_check_branch
      %30 = sbr.rel (0) target = $region13
    $region12: #{tpu_custom_call.1} parent=1 // pred_region
      %s32 = ssub.s32 8192, 8192
      %33 = vsyncadd [#allocation5], %s32
      %s34 = sshll.u32 [#allocation4], 4
      %s35 = int_to_ptr.vmem [resolvable:$true] %s34
      %40 = dma.hbm_to_vmem [thread:$0]  %s2, 8192, %s35, [#allocation5], 512, 512, 32
    $region13: #{tpu_custom_call.1} parent=1 // pred_fallthru
      _
    // Predicated region
    $region14: #{tpu_custom_call.1} parent=1 // pred_check
      _
    $region15: #{tpu_custom_call.1} parent=1 // pred_check_branch
      %42 = sbr.rel (0) target = $region17
    $region16: #{tpu_custom_call.1} parent=1 // pred_region
      _
    $region17: #{tpu_custom_call.1} parent=1 // pred_fallthru
      _
    // Predicated region
    $region18: #{tpu_custom_call.1} parent=1 // pred_check
      _
    $region19: #{tpu_custom_call.1} parent=1 // pred_check_branch
      %44 = sbr.rel (0) target = $region21
    $region20: #{tpu_custom_call.1} parent=1 // pred_region
      %s46 = ssub.s32 16384, 16384
      %47 = vsyncadd [#allocation8], %s46
      %s48 = sshll.u32 [#allocation7], 4
      %s49 = int_to_ptr.vmem [resolvable:$true] %s48
      %54 = dma.hbm_to_vmem [thread:$0]  %s4, 16384, %s49, [#allocation8], 256, 256, 16
    $region21: #{tpu_custom_call.1} parent=1 // pred_fallthru
      _
    // Predicated region
    $region22: #{tpu_custom_call.1} parent=1 // pred_check
      _
    $region23: #{tpu_custom_call.1} parent=1 // pred_check_branch
      %56 = sbr.rel (0) target = $region25
    $region24: #{tpu_custom_call.1} parent=1 // pred_region
      _
    $region25: #{tpu_custom_call.1} parent=1 // pred_fallthru
      _
    // Predicated region
    $region26: #{tpu_custom_call.1} parent=1 // pred_check
      _
    $region27: #{tpu_custom_call.1} parent=1 // pred_check_branch
      %58 = sbr.rel (0) target = $region29
    $region28: #{tpu_custom_call.1} parent=1 // pred_region
      _
    $region29: #{tpu_custom_call.1} parent=1 // pred_fallthru
      _
    // Predicated region
    $region30: #{tpu_custom_call.1} parent=1 // pred_check
      _
    $region31: #{tpu_custom_call.1} parent=1 // pred_check_branch
      %60 = sbr.rel (0) target = $region33
    $region32: #{tpu_custom_call.1} parent=1 // pred_region
      _
    $region33: #{tpu_custom_call.1} parent=1 // pred_fallthru
      _
    // Predicated region
    $region34: #{tpu_custom_call.1} parent=1 // pred_check
      _
    $region35: #{tpu_custom_call.1} parent=1 // pred_check_branch
      %62 = sbr.rel (0) target = $region37
    $region36: #{tpu_custom_call.1} parent=1 // pred_region
      _
    $region37: #{tpu_custom_call.1} parent=1 // pred_fallthru
      _
    // Predicated region
    $region38: #{tpu_custom_call.1} parent=1 // pred_check
      _
    $region39: #{tpu_custom_call.1} parent=1 // pred_check_branch
      %64 = sbr.rel (0) target = $region41
    $region40: #{tpu_custom_call.1} parent=1 // pred_region
      _
    $region41: #{tpu_custom_call.1} parent=1 // pred_fallthru
      _
    // Predicated region
    $region42: #{tpu_custom_call.1} parent=1 // pred_check
      _
    $region43: #{tpu_custom_call.1} parent=1 // pred_check_branch
      %66 = sbr.rel (0) target = $region45
    $region44: #{tpu_custom_call.1} parent=1 // pred_region
      _
    $region45: #{tpu_custom_call.1} parent=1 // pred_fallthru
      _
    // Predicated region
    $region46: #{tpu_custom_call.1} parent=1 // pred_check
      _
    $region47: #{tpu_custom_call.1} parent=1 // pred_check_branch
      %68 = sbr.rel (0) target = $region49
    $region48: #{tpu_custom_call.1} parent=1 // pred_region
      _
    $region49: #{tpu_custom_call.1} parent=1 // pred_fallthru
      _
    // Predicated region
    $region50: #{tpu_custom_call.1} parent=1 // pred_check
      _
    $region51: #{tpu_custom_call.1} parent=1 // pred_check_branch
      %70 = sbr.rel (0) target = $region53
    $region52: #{tpu_custom_call.1} parent=1 // pred_region
      _
    $region53: #{tpu_custom_call.1} parent=1 // pred_fallthru
      _
    // Predicated region
    $region54: #{tpu_custom_call.1} parent=1 // pred_check
      _
    $region55: #{tpu_custom_call.1} parent=1 // pred_check_branch
      %72 = sbr.rel (0) target = $region57
    $region56: #{tpu_custom_call.1} parent=1 // pred_region
      _
    $region57: #{tpu_custom_call.1} parent=1 // pred_fallthru
      _
    // Predicated region
    $region58: #{tpu_custom_call.1} parent=1 // pred_check
      _
    $region59: #{tpu_custom_call.1} parent=1 // pred_check_branch
      %74 = sbr.rel (0) target = $region61
    $region60: #{tpu_custom_call.1} parent=1 // pred_region
      _
    $region61: #{tpu_custom_call.1} parent=1 // pred_fallthru
      _
    // Predicated region
    $region62: #{tpu_custom_call.1} parent=1 // pred_check
      _
    $region63: #{tpu_custom_call.1} parent=1 // pred_check_branch
      %76 = sbr.rel (0) target = $region65
    $region64: #{tpu_custom_call.1} parent=1 // pred_region
      %77 = dma.done [#allocation5], 8192
    $region65: #{tpu_custom_call.1} parent=1 // pred_fallthru
      _
    // Predicated region
    $region66: #{tpu_custom_call.1} parent=1 // pred_check
      _
    $region67: #{tpu_custom_call.1} parent=1 // pred_check_branch
      %79 = sbr.rel (0) target = $region69
    $region68: #{tpu_custom_call.1} parent=1 // pred_region
      %80 = dma.done [#allocation8], 16384
    $region69: #{tpu_custom_call.1} parent=1 // pred_fallthru
      _
    %v81 = vld [vmem:[%s0] sm:$0xff]
    %v82 = vld [vmem:[%s0 + $0x8] sm:$0xff]
    %v83 = vld [vmem:[%s0 + $0x10] sm:$0xff]
    %v84 = vld [vmem:[%s0 + $0x18] sm:$0xff]
    %v85 = vld [vmem:[%s0 + $0x20] sm:$0xff]
    %v86 = vld [vmem:[%s0 + $0x28] sm:$0xff]
    %v87 = vld [vmem:[%s0 + $0x30] sm:$0xff]
    %v88 = vld [vmem:[%s0 + $0x38] sm:$0xff]
    %v89 = vld [vmem:[%s0 + $0x40] sm:$0xff]
    %v90 = vld [vmem:[%s0 + $0x48] sm:$0xff]
    %v91 = vld [vmem:[%s0 + $0x50] sm:$0xff]
    %v92 = vld [vmem:[%s0 + $0x58] sm:$0xff]
    %v93 = vld [vmem:[%s0 + $0x60] sm:$0xff]
    %v94 = vld [vmem:[%s0 + $0x68] sm:$0xff]
    %v95 = vld [vmem:[%s0 + $0x70] sm:$0xff]
    %v96 = vld [vmem:[%s0 + $0x78] sm:$0xff]
    %v97 = vld [vmem:[#allocation4] sm:$0xff]
    %v98 = vld [vmem:[#allocation4 + $0x8] sm:$0xff]
    %v99 = vld [vmem:[#allocation4 + $0x10] sm:$0xff]
    %v100 = vld [vmem:[#allocation4 + $0x18] sm:$0xff]
    %v101 = vld [vmem:[#allocation4 + $0x20] sm:$0xff]
    %v102 = vld [vmem:[#allocation4 + $0x28] sm:$0xff]
    %v103 = vld [vmem:[#allocation4 + $0x30] sm:$0xff]
    %v104 = vld [vmem:[#allocation4 + $0x38] sm:$0xff]
    %v105 = vld [vmem:[#allocation4 + $0x40] sm:$0xff]
    %v106 = vld [vmem:[#allocation4 + $0x48] sm:$0xff]
    %v107 = vld [vmem:[#allocation4 + $0x50] sm:$0xff]
    %v108 = vld [vmem:[#allocation4 + $0x58] sm:$0xff]
    %v109 = vld [vmem:[#allocation4 + $0x60] sm:$0xff]
    %v110 = vld [vmem:[#allocation4 + $0x68] sm:$0xff]
    %v111 = vld [vmem:[#allocation4 + $0x70] sm:$0xff]
    %v112 = vld [vmem:[#allocation4 + $0x78] sm:$0xff]
    %v113 = vld [vmem:[#allocation4 + $0x80] sm:$0xff]
    %v114 = vld [vmem:[#allocation4 + $0x88] sm:$0xff]
    %v115 = vld [vmem:[#allocation4 + $0x90] sm:$0xff]
    %v116 = vld [vmem:[#allocation4 + $0x98] sm:$0xff]
    %v117 = vld [vmem:[#allocation4 + $0xa0] sm:$0xff]
    %v118 = vld [vmem:[#allocation4 + $0xa8] sm:$0xff]
    %v119 = vld [vmem:[#allocation4 + $0xb0] sm:$0xff]
    %v120 = vld [vmem:[#allocation4 + $0xb8] sm:$0xff]
    %v121 = vld [vmem:[#allocation4 + $0xc0] sm:$0xff]
    %v122 = vld [vmem:[#allocation4 + $0xc8] sm:$0xff]
    %v123 = vld [vmem:[#allocation4 + $0xd0] sm:$0xff]
    %v124 = vld [vmem:[#allocation4 + $0xd8] sm:$0xff]
    %v125 = vld [vmem:[#allocation4 + $0xe0] sm:$0xff]
    %v126 = vld [vmem:[#allocation4 + $0xe8] sm:$0xff]
    %v127 = vld [vmem:[#allocation4 + $0xf0] sm:$0xff]
    %v128 = vld [vmem:[#allocation4 + $0xf8] sm:$0xff]
    %v129 = vld [vmem:[#allocation4 + $0x100] sm:$0xff]
    %v130 = vld [vmem:[#allocation4 + $0x108] sm:$0xff]
    %v131 = vld [vmem:[#allocation4 + $0x110] sm:$0xff]
    %v132 = vld [vmem:[#allocation4 + $0x118] sm:$0xff]
    %v133 = vld [vmem:[#allocation4 + $0x120] sm:$0xff]
    %v134 = vld [vmem:[#allocation4 + $0x128] sm:$0xff]
    %v135 = vld [vmem:[#allocation4 + $0x130] sm:$0xff]
    %v136 = vld [vmem:[#allocation4 + $0x138] sm:$0xff]
    %v137 = vld [vmem:[#allocation4 + $0x140] sm:$0xff]
    %v138 = vld [vmem:[#allocation4 + $0x148] sm:$0xff]
    %v139 = vld [vmem:[#allocation4 + $0x150] sm:$0xff]
    %v140 = vld [vmem:[#allocation4 + $0x158] sm:$0xff]
    %v141 = vld [vmem:[#allocation4 + $0x160] sm:$0xff]
    %v142 = vld [vmem:[#allocation4 + $0x168] sm:$0xff]
    %v143 = vld [vmem:[#allocation4 + $0x170] sm:$0xff]
    %v144 = vld [vmem:[#allocation4 + $0x178] sm:$0xff]
    %v145 = vld [vmem:[#allocation4 + $0x180] sm:$0xff]
    %v146 = vld [vmem:[#allocation4 + $0x188] sm:$0xff]
    %v147 = vld [vmem:[#allocation4 + $0x190] sm:$0xff]
    %v148 = vld [vmem:[#allocation4 + $0x198] sm:$0xff]
    %v149 = vld [vmem:[#allocation4 + $0x1a0] sm:$0xff]
    %v150 = vld [vmem:[#allocation4 + $0x1a8] sm:$0xff]
    %v151 = vld [vmem:[#allocation4 + $0x1b0] sm:$0xff]
    %v152 = vld [vmem:[#allocation4 + $0x1b8] sm:$0xff]
    %v153 = vld [vmem:[#allocation4 + $0x1c0] sm:$0xff]
    %v154 = vld [vmem:[#allocation4 + $0x1c8] sm:$0xff]
    %v155 = vld [vmem:[#allocation4 + $0x1d0] sm:$0xff]
    %v156 = vld [vmem:[#allocation4 + $0x1d8] sm:$0xff]
    %v157 = vld [vmem:[#allocation4 + $0x1e0] sm:$0xff]
    %v158 = vld [vmem:[#allocation4 + $0x1e8] sm:$0xff]
    %v159 = vld [vmem:[#allocation4 + $0x1f0] sm:$0xff]
    %v160 = vld [vmem:[#allocation4 + $0x1f8] sm:$0xff]
    %161 = vmatprep.subr.mxu0 %v98
    %162 = vmatpush1.msra.mxu0 %v97
    %163 = vmatprep.subr.mxu0 %v102
    %164 = vmatpush1.msra.mxu0 %v101
    %165 = vmatprep.subr.mxu0 %v106
    %166 = vmatpush1.msra.mxu0 %v105
    %167 = vmatprep.subr.mxu0 %v110
    %168 = vmatpush1.msra.mxu0 %v109
    %169 = vmatprep.subr.mxu0 %v114
    %170 = vmatpush1.msra.mxu0 %v113
    %171 = vmatprep.subr.mxu0 %v118
    %172 = vmatpush1.msra.mxu0 %v117
    %173 = vmatprep.subr.mxu0 %v122
    %174 = vmatpush1.msra.mxu0 %v121
    %175 = vmatprep.subr.mxu0 %v126
    %176 = vmatpush1.msra.mxu0 %v125
    %177 = vmatprep.subr.mxu0 %v130
    %178 = vmatpush1.msra.mxu0 %v129
    %179 = vmatprep.subr.mxu0 %v134
    %180 = vmatpush1.msra.mxu0 %v133
    %181 = vmatprep.subr.mxu0 %v138
    %182 = vmatpush1.msra.mxu0 %v137
    %183 = vmatprep.subr.mxu0 %v142
    %184 = vmatpush1.msra.mxu0 %v141
    %185 = vmatprep.subr.mxu0 %v146
    %186 = vmatpush1.msra.mxu0 %v145
    %187 = vmatprep.subr.mxu0 %v150
    %188 = vmatpush1.msra.mxu0 %v149
    %189 = vmatprep.subr.mxu0 %v154
    %190 = vmatpush1.msra.mxu0 %v153
    %191 = vmatprep.subr.mxu0 %v158
    %192 = vmatpush1.msra.mxu0 %v157
    %193 = vmatprep.subr.mxu0 0.0
    %194 = vmatpush1.msra.mxu0 0.0
    %195 = vmatprep.subr.mxu0 0.0
    %196 = vmatpush1.msra.mxu0 0.0
    %197 = vmatprep.subr.mxu0 0.0
    %198 = vmatpush1.msra.mxu0 0.0
    %199 = vmatprep.subr.mxu0 0.0
    %200 = vmatpush1.msra.mxu0 0.0
    %201 = vmatprep.subr.mxu0 0.0
    %202 = vmatpush1.msra.mxu0 0.0
    %203 = vmatprep.subr.mxu0 0.0
    %204 = vmatpush1.msra.mxu0 0.0
    %205 = vmatprep.subr.mxu0 0.0
    %206 = vmatpush1.msra.mxu0 0.0
    %207 = vmatprep.subr.mxu0 0.0
    %208 = vmatpush1.msra.mxu0 0.0
    %209 = vmatprep.subr.mxu0 0.0
    %210 = vmatpush1.msra.mxu0 0.0
    %211 = vmatprep.subr.mxu0 0.0
    %212 = vmatpush1.msra.mxu0 0.0
    %213 = vmatprep.subr.mxu0 0.0
    %214 = vmatpush1.msra.mxu0 0.0
    %215 = vmatprep.subr.mxu0 0.0
    %216 = vmatpush1.msra.mxu0 0.0
    %217 = vmatprep.subr.mxu0 0.0
    %218 = vmatpush1.msra.mxu0 0.0
    %219 = vmatprep.subr.mxu0 0.0
    %220 = vmatpush1.msra.mxu0 0.0
    %221 = vmatprep.subr.mxu0 0.0
    %222 = vmatpush1.msra.mxu0 0.0
    %223 = vmatprep.subr.mxu0 0.0
    %224 = vmatpush1.msra.mxu0 0.0
    %225 = vmatprep.mubr.f32.mxu0 0.0
    %226 = vmatmul.mubr.f32.gmra.mrb[0].mxu0 %v81
    %v227 = vpop.f32.mrb[0].mxu0
    %v228 = vadd.f32 0.0, %v227
    %v229 = vpop.f32.mrb[0].mxu0
    %v230 = vadd.f32 0.0, %v229
    %231 = vmatprep.mubr.f32.mxu0 0.0
    %232 = vmatmul.mubr.f32.gmra.mrb[0].mxu0 %v82
    %v233 = vpop.f32.mrb[0].mxu0
    %v234 = vadd.f32 0.0, %v233
    %v235 = vpop.f32.mrb[0].mxu0
    %v236 = vadd.f32 0.0, %v235
    %237 = vmatprep.mubr.f32.mxu0 0.0
    %238 = vmatmul.mubr.f32.gmra.mrb[0].mxu0 %v83
    %v239 = vpop.f32.mrb[0].mxu0
    %v240 = vadd.f32 0.0, %v239
    %v241 = vpop.f32.mrb[0].mxu0
    %v242 = vadd.f32 0.0, %v241
    %243 = vmatprep.mubr.f32.mxu0 0.0
    %244 = vmatmul.mubr.f32.gmra.mrb[0].mxu0 %v84
    %v245 = vpop.f32.mrb[0].mxu0
    %v246 = vadd.f32 0.0, %v245
    %v247 = vpop.f32.mrb[0].mxu0
    %v248 = vadd.f32 0.0, %v247
    %249 = vmatprep.mubr.f32.mxu0 0.0
    %250 = vmatmul.mubr.f32.gmra.mrb[0].mxu0 %v85
    %v251 = vpop.f32.mrb[0].mxu0
    %v252 = vadd.f32 0.0, %v251
    %v253 = vpop.f32.mrb[0].mxu0
    %v254 = vadd.f32 0.0, %v253
    %255 = vmatprep.mubr.f32.mxu0 0.0
    %256 = vmatmul.mubr.f32.gmra.mrb[0].mxu0 %v86
    %v257 = vpop.f32.mrb[0].mxu0
    %v258 = vadd.f32 0.0, %v257
    %v259 = vpop.f32.mrb[0].mxu0
    %v260 = vadd.f32 0.0, %v259
    %261 = vmatprep.mubr.f32.mxu0 0.0
    %262 = vmatmul.mubr.f32.gmra.mrb[0].mxu0 %v87
    %v263 = vpop.f32.mrb[0].mxu0
    %v264 = vadd.f32 0.0, %v263
    %v265 = vpop.f32.mrb[0].mxu0
    %v266 = vadd.f32 0.0, %v265
    %267 = vmatprep.mubr.f32.mxu0 0.0
    %268 = vmatmul.mubr.f32.gmra.mrb[0].mxu0 %v88
    %v269 = vpop.f32.mrb[0].mxu0
    %v270 = vadd.f32 0.0, %v269
    %v271 = vpop.f32.mrb[0].mxu0
    %v272 = vadd.f32 0.0, %v271
    %273 = vmatprep.mubr.f32.mxu0 0.0
    %274 = vmatmul.mubr.f32.gmra.mrb[0].mxu0 %v89
    %v275 = vpop.f32.mrb[0].mxu0
    %v276 = vadd.f32 0.0, %v275
    %v277 = vpop.f32.mrb[0].mxu0
    %v278 = vadd.f32 0.0, %v277
    %279 = vmatprep.mubr.f32.mxu0 0.0
    %280 = vmatmul.mubr.f32.gmra.mrb[0].mxu0 %v90
    %v281 = vpop.f32.mrb[0].mxu0
    %v282 = vadd.f32 0.0, %v281
    %v283 = vpop.f32.mrb[0].mxu0
    %v284 = vadd.f32 0.0, %v283
    %285 = vmatprep.mubr.f32.mxu0 0.0
    %286 = vmatmul.mubr.f32.gmra.mrb[0].mxu0 %v91
    %v287 = vpop.f32.mrb[0].mxu0
    %v288 = vadd.f32 0.0, %v287
    %v289 = vpop.f32.mrb[0].mxu0
    %v290 = vadd.f32 0.0, %v289
    %291 = vmatprep.mubr.f32.mxu0 0.0
    %292 = vmatmul.mubr.f32.gmra.mrb[0].mxu0 %v92
    %v293 = vpop.f32.mrb[0].mxu0
    %v294 = vadd.f32 0.0, %v293
    %v295 = vpop.f32.mrb[0].mxu0
    %v296 = vadd.f32 0.0, %v295
    %297 = vmatprep.mubr.f32.mxu0 0.0
    %298 = vmatmul.mubr.f32.gmra.mrb[0].mxu0 %v93
    %v299 = vpop.f32.mrb[0].mxu0
    %v300 = vadd.f32 0.0, %v299
    %v301 = vpop.f32.mrb[0].mxu0
    %v302 = vadd.f32 0.0, %v301
    %303 = vmatprep.mubr.f32.mxu0 0.0
    %304 = vmatmul.mubr.f32.gmra.mrb[0].mxu0 %v94
    %v305 = vpop.f32.mrb[0].mxu0
    %v306 = vadd.f32 0.0, %v305
    %v307 = vpop.f32.mrb[0].mxu0
    %v308 = vadd.f32 0.0, %v307
    %309 = vmatprep.mubr.f32.mxu0 0.0
    %310 = vmatmul.mubr.f32.gmra.mrb[0].mxu0 %v95
    %v311 = vpop.f32.mrb[0].mxu0
    %v312 = vadd.f32 0.0, %v311
    %v313 = vpop.f32.mrb[0].mxu0
    %v314 = vadd.f32 0.0, %v313
    %315 = vmatprep.mubr.f32.mxu0 0.0
    %316 = vmatmul.mubr.f32.gmra.mrb[0].mxu0 %v96
    %v317 = vpop.f32.mrb[0].mxu0
    %v318 = vadd.f32 0.0, %v317
    %v319 = vpop.f32.mrb[0].mxu0
    %v320 = vadd.f32 0.0, %v319
    %321 = vdwg.mxu0
    %322 = vmatprep.subr.mxu0 %v100
    %323 = vmatpush1.msra.mxu0 %v99
    %324 = vmatprep.subr.mxu0 %v104
    %325 = vmatpush1.msra.mxu0 %v103
    %326 = vmatprep.subr.mxu0 %v108
    %327 = vmatpush1.msra.mxu0 %v107
    %328 = vmatprep.subr.mxu0 %v112
    %329 = vmatpush1.msra.mxu0 %v111
    %330 = vmatprep.subr.mxu0 %v116
    %331 = vmatpush1.msra.mxu0 %v115
    %332 = vmatprep.subr.mxu0 %v120
    %333 = vmatpush1.msra.mxu0 %v119
    %334 = vmatprep.subr.mxu0 %v124
    %335 = vmatpush1.msra.mxu0 %v123
    %336 = vmatprep.subr.mxu0 %v128
    %337 = vmatpush1.msra.mxu0 %v127
    %338 = vmatprep.subr.mxu0 %v132
    %339 = vmatpush1.msra.mxu0 %v131
    %340 = vmatprep.subr.mxu0 %v136
    %341 = vmatpush1.msra.mxu0 %v135
    %342 = vmatprep.subr.mxu0 %v140
    %343 = vmatpush1.msra.mxu0 %v139
    %344 = vmatprep.subr.mxu0 %v144
    %345 = vmatpush1.msra.mxu0 %v143
    %346 = vmatprep.subr.mxu0 %v148
    %347 = vmatpush1.msra.mxu0 %v147
    %348 = vmatprep.subr.mxu0 %v152
    %349 = vmatpush1.msra.mxu0 %v151
    %350 = vmatprep.subr.mxu0 %v156
    %351 = vmatpush1.msra.mxu0 %v155
    %352 = vmatprep.subr.mxu0 %v160
    %353 = vmatpush1.msra.mxu0 %v159
    %354 = vmatprep.subr.mxu0 0.0
    %355 = vmatpush1.msra.mxu0 0.0
    %356 = vmatprep.subr.mxu0 0.0
    %357 = vmatpush1.msra.mxu0 0.0
    %358 = vmatprep.subr.mxu0 0.0
    %359 = vmatpush1.msra.mxu0 0.0
    %360 = vmatprep.subr.mxu0 0.0
    %361 = vmatpush1.msra.mxu0 0.0
    %362 = vmatprep.subr.mxu0 0.0
    %363 = vmatpush1.msra.mxu0 0.0
    %364 = vmatprep.subr.mxu0 0.0
    %365 = vmatpush1.msra.mxu0 0.0
    %366 = vmatprep.subr.mxu0 0.0
    %367 = vmatpush1.msra.mxu0 0.0
    %368 = vmatprep.subr.mxu0 0.0
    %369 = vmatpush1.msra.mxu0 0.0
    %370 = vmatprep.subr.mxu0 0.0
    %371 = vmatpush1.msra.mxu0 0.0
    %372 = vmatprep.subr.mxu0 0.0
    %373 = vmatpush1.msra.mxu0 0.0
    %374 = vmatprep.subr.mxu0 0.0
    %375 = vmatpush1.msra.mxu0 0.0
    %376 = vmatprep.subr.mxu0 0.0
    %377 = vmatpush1.msra.mxu0 0.0
    %378 = vmatprep.subr.mxu0 0.0
    %379 = vmatpush1.msra.mxu0 0.0
    %380 = vmatprep.subr.mxu0 0.0
    %381 = vmatpush1.msra.mxu0 0.0
    %382 = vmatprep.subr.mxu0 0.0
    %383 = vmatpush1.msra.mxu0 0.0
    %384 = vmatprep.subr.mxu0 0.0
    %385 = vmatpush1.msra.mxu0 0.0
    %386 = vmatprep.mubr.f32.mxu0 0.0
    %387 = vmatmul.mubr.f32.gmra.mrb[0].mxu0 %v81
    %v388 = vpop.f32.mrb[0].mxu0
    %v389 = vadd.f32 0.0, %v388
    %v390 = vpop.f32.mrb[0].mxu0
    %v391 = vadd.f32 0.0, %v390
    %392 = vmatprep.mubr.f32.mxu0 0.0
    %393 = vmatmul.mubr.f32.gmra.mrb[0].mxu0 %v82
    %v394 = vpop.f32.mrb[0].mxu0
    %v395 = vadd.f32 0.0, %v394
    %v396 = vpop.f32.mrb[0].mxu0
    %v397 = vadd.f32 0.0, %v396
    %398 = vmatprep.mubr.f32.mxu0 0.0
    %399 = vmatmul.mubr.f32.gmra.mrb[0].mxu0 %v83
    %v400 = vpop.f32.mrb[0].mxu0
    %v401 = vadd.f32 0.0, %v400
    %v402 = vpop.f32.mrb[0].mxu0
    %v403 = vadd.f32 0.0, %v402
    %404 = vmatprep.mubr.f32.mxu0 0.0
    %405 = vmatmul.mubr.f32.gmra.mrb[0].mxu0 %v84
    %v406 = vpop.f32.mrb[0].mxu0
    %v407 = vadd.f32 0.0, %v406
    %v408 = vpop.f32.mrb[0].mxu0
    %v409 = vadd.f32 0.0, %v408
    %410 = vmatprep.mubr.f32.mxu0 0.0
    %411 = vmatmul.mubr.f32.gmra.mrb[0].mxu0 %v85
    %v412 = vpop.f32.mrb[0].mxu0
    %v413 = vadd.f32 0.0, %v412
    %v414 = vpop.f32.mrb[0].mxu0
    %v415 = vadd.f32 0.0, %v414
    %416 = vmatprep.mubr.f32.mxu0 0.0
    %417 = vmatmul.mubr.f32.gmra.mrb[0].mxu0 %v86
    %v418 = vpop.f32.mrb[0].mxu0
    %v419 = vadd.f32 0.0, %v418
    %v420 = vpop.f32.mrb[0].mxu0
    %v421 = vadd.f32 0.0, %v420
    %422 = vmatprep.mubr.f32.mxu0 0.0
    %423 = vmatmul.mubr.f32.gmra.mrb[0].mxu0 %v87
    %v424 = vpop.f32.mrb[0].mxu0
    %v425 = vadd.f32 0.0, %v424
    %v426 = vpop.f32.mrb[0].mxu0
    %v427 = vadd.f32 0.0, %v426
    %428 = vmatprep.mubr.f32.mxu0 0.0
    %429 = vmatmul.mubr.f32.gmra.mrb[0].mxu0 %v88
    %v430 = vpop.f32.mrb[0].mxu0
    %v431 = vadd.f32 0.0, %v430
    %v432 = vpop.f32.mrb[0].mxu0
    %v433 = vadd.f32 0.0, %v432
    %434 = vmatprep.mubr.f32.mxu0 0.0
    %435 = vmatmul.mubr.f32.gmra.mrb[0].mxu0 %v89
    %v436 = vpop.f32.mrb[0].mxu0
    %v437 = vadd.f32 0.0, %v436
    %v438 = vpop.f32.mrb[0].mxu0
    %v439 = vadd.f32 0.0, %v438
    %440 = vmatprep.mubr.f32.mxu0 0.0
    %441 = vmatmul.mubr.f32.gmra.mrb[0].mxu0 %v90
    %v442 = vpop.f32.mrb[0].mxu0
    %v443 = vadd.f32 0.0, %v442
    %v444 = vpop.f32.mrb[0].mxu0
    %v445 = vadd.f32 0.0, %v444
    %446 = vmatprep.mubr.f32.mxu0 0.0
    %447 = vmatmul.mubr.f32.gmra.mrb[0].mxu0 %v91
    %v448 = vpop.f32.mrb[0].mxu0
    %v449 = vadd.f32 0.0, %v448
    %v450 = vpop.f32.mrb[0].mxu0
    %v451 = vadd.f32 0.0, %v450
    %452 = vmatprep.mubr.f32.mxu0 0.0
    %453 = vmatmul.mubr.f32.gmra.mrb[0].mxu0 %v92
    %v454 = vpop.f32.mrb[0].mxu0
    %v455 = vadd.f32 0.0, %v454
    %v456 = vpop.f32.mrb[0].mxu0
    %v457 = vadd.f32 0.0, %v456
    %458 = vmatprep.mubr.f32.mxu0 0.0
    %459 = vmatmul.mubr.f32.gmra.mrb[0].mxu0 %v93
    %v460 = vpop.f32.mrb[0].mxu0
    %v461 = vadd.f32 0.0, %v460
    %v462 = vpop.f32.mrb[0].mxu0
    %v463 = vadd.f32 0.0, %v462
    %464 = vmatprep.mubr.f32.mxu0 0.0
    %465 = vmatmul.mubr.f32.gmra.mrb[0].mxu0 %v94
    %v466 = vpop.f32.mrb[0].mxu0
    %v467 = vadd.f32 0.0, %v466
    %v468 = vpop.f32.mrb[0].mxu0
    %v469 = vadd.f32 0.0, %v468
    %470 = vmatprep.mubr.f32.mxu0 0.0
    %471 = vmatmul.mubr.f32.gmra.mrb[0].mxu0 %v95
    %v472 = vpop.f32.mrb[0].mxu0
    %v473 = vadd.f32 0.0, %v472
    %v474 = vpop.f32.mrb[0].mxu0
    %v475 = vadd.f32 0.0, %v474
    %476 = vmatprep.mubr.f32.mxu0 0.0
    %477 = vmatmul.mubr.f32.gmra.mrb[0].mxu0 %v96
    %v478 = vpop.f32.mrb[0].mxu0
    %v479 = vadd.f32 0.0, %v478
    %v480 = vpop.f32.mrb[0].mxu0
    %v481 = vadd.f32 0.0, %v480
    %482 = vdwg.mxu0
    %p483 = scmp.eq.s32.totalorder 0, 0
    // Predicated region
    $region70: #{tpu_custom_call.1} parent=1 // pred_check
      %p484 = pneg %p483
    $region71: #{tpu_custom_call.1} parent=1 // pred_check_branch
      %486 = sbr.rel (%p484) target = $region73
    $region72: #{tpu_custom_call.1} parent=1 // pred_region
      %487 = vst [vmem:[#allocation2] sm:$0xff] %v228
      %488 = vst [vmem:[#allocation2 + $0x8] sm:$0xff] %v230
      %489 = vst [vmem:[#allocation2 + $0x10] sm:$0xff] %v389
      %490 = vst [vmem:[#allocation2 + $0x18] sm:$0xff] %v391
      %491 = vst [vmem:[#allocation2 + $0x20] sm:$0xff] %v234
      %492 = vst [vmem:[#allocation2 + $0x28] sm:$0xff] %v236
      %493 = vst [vmem:[#allocation2 + $0x30] sm:$0xff] %v395
      %494 = vst [vmem:[#allocation2 + $0x38] sm:$0xff] %v397
      %495 = vst [vmem:[#allocation2 + $0x40] sm:$0xff] %v240
      %496 = vst [vmem:[#allocation2 + $0x48] sm:$0xff] %v242
      %497 = vst [vmem:[#allocation2 + $0x50] sm:$0xff] %v401
      %498 = vst [vmem:[#allocation2 + $0x58] sm:$0xff] %v403
      %499 = vst [vmem:[#allocation2 + $0x60] sm:$0xff] %v246
      %500 = vst [vmem:[#allocation2 + $0x68] sm:$0xff] %v248
      %501 = vst [vmem:[#allocation2 + $0x70] sm:$0xff] %v407
      %502 = vst [vmem:[#allocation2 + $0x78] sm:$0xff] %v409
      %503 = vst [vmem:[#allocation2 + $0x80] sm:$0xff] %v252
      %504 = vst [vmem:[#allocation2 + $0x88] sm:$0xff] %v254
      %505 = vst [vmem:[#allocation2 + $0x90] sm:$0xff] %v413
      %506 = vst [vmem:[#allocation2 + $0x98] sm:$0xff] %v415
      %507 = vst [vmem:[#allocation2 + $0xa0] sm:$0xff] %v258
      %508 = vst [vmem:[#allocation2 + $0xa8] sm:$0xff] %v260
      %509 = vst [vmem:[#allocation2 + $0xb0] sm:$0xff] %v419
      %510 = vst [vmem:[#allocation2 + $0xb8] sm:$0xff] %v421
      %511 = vst [vmem:[#allocation2 + $0xc0] sm:$0xff] %v264
      %512 = vst [vmem:[#allocation2 + $0xc8] sm:$0xff] %v266
      %513 = vst [vmem:[#allocation2 + $0xd0] sm:$0xff] %v425
      %514 = vst [vmem:[#allocation2 + $0xd8] sm:$0xff] %v427
      %515 = vst [vmem:[#allocation2 + $0xe0] sm:$0xff] %v270
      %516 = vst [vmem:[#allocation2 + $0xe8] sm:$0xff] %v272
      %517 = vst [vmem:[#allocation2 + $0xf0] sm:$0xff] %v431
      %518 = vst [vmem:[#allocation2 + $0xf8] sm:$0xff] %v433
      %519 = vst [vmem:[#allocation2 + $0x100] sm:$0xff] %v276
      %520 = vst [vmem:[#allocation2 + $0x108] sm:$0xff] %v278
      %521 = vst [vmem:[#allocation2 + $0x110] sm:$0xff] %v437
      %522 = vst [vmem:[#allocation2 + $0x118] sm:$0xff] %v439
      %523 = vst [vmem:[#allocation2 + $0x120] sm:$0xff] %v282
      %524 = vst [vmem:[#allocation2 + $0x128] sm:$0xff] %v284
      %525 = vst [vmem:[#allocation2 + $0x130] sm:$0xff] %v443
      %526 = vst [vmem:[#allocation2 + $0x138] sm:$0xff] %v445
      %527 = vst [vmem:[#allocation2 + $0x140] sm:$0xff] %v288
      %528 = vst [vmem:[#allocation2 + $0x148] sm:$0xff] %v290
      %529 = vst [vmem:[#allocation2 + $0x150] sm:$0xff] %v449
      %530 = vst [vmem:[#allocation2 + $0x158] sm:$0xff] %v451
      %531 = vst [vmem:[#allocation2 + $0x160] sm:$0xff] %v294
      %532 = vst [vmem:[#allocation2 + $0x168] sm:$0xff] %v296
      %533 = vst [vmem:[#allocation2 + $0x170] sm:$0xff] %v455
      %534 = vst [vmem:[#allocation2 + $0x178] sm:$0xff] %v457
      %535 = vst [vmem:[#allocation2 + $0x180] sm:$0xff] %v300
      %536 = vst [vmem:[#allocation2 + $0x188] sm:$0xff] %v302
      %537 = vst [vmem:[#allocation2 + $0x190] sm:$0xff] %v461
      %538 = vst [vmem:[#allocation2 + $0x198] sm:$0xff] %v463
      %539 = vst [vmem:[#allocation2 + $0x1a0] sm:$0xff] %v306
      %540 = vst [vmem:[#allocation2 + $0x1a8] sm:$0xff] %v308
      %541 = vst [vmem:[#allocation2 + $0x1b0] sm:$0xff] %v467
      %542 = vst [vmem:[#allocation2 + $0x1b8] sm:$0xff] %v469
      %543 = vst [vmem:[#allocation2 + $0x1c0] sm:$0xff] %v312
      %544 = vst [vmem:[#allocation2 + $0x1c8] sm:$0xff] %v314
      %545 = vst [vmem:[#allocation2 + $0x1d0] sm:$0xff] %v473
      %546 = vst [vmem:[#allocation2 + $0x1d8] sm:$0xff] %v475
      %547 = vst [vmem:[#allocation2 + $0x1e0] sm:$0xff] %v318
      %548 = vst [vmem:[#allocation2 + $0x1e8] sm:$0xff] %v320
      %549 = vst [vmem:[#allocation2 + $0x1f0] sm:$0xff] %v479
      %550 = vst [vmem:[#allocation2 + $0x1f8] sm:$0xff] %v481
    $region73: #{tpu_custom_call.1} parent=1 // pred_fallthru
      _
    %p551 = scmp.gt.s32.totalorder 0, 0
    // Predicated region
    $region74: #{tpu_custom_call.1} parent=1 // pred_check
      %p552 = pneg %p551
    $region75: #{tpu_custom_call.1} parent=1 // pred_check_branch
      %554 = sbr.rel (%p552) target = $region77
    $region76: #{tpu_custom_call.1} parent=1 // pred_region
      %v555 = vld [vmem:[#allocation2] sm:$0xff]
      %v556 = vld [vmem:[#allocation2 + $0x8] sm:$0xff]
      %v557 = vld [vmem:[#allocation2 + $0x10] sm:$0xff]
      %v558 = vld [vmem:[#allocation2 + $0x18] sm:$0xff]
      %v559 = vld [vmem:[#allocation2 + $0x20] sm:$0xff]
      %v560 = vld [vmem:[#allocation2 + $0x28] sm:$0xff]
      %v561 = vld [vmem:[#allocation2 + $0x30] sm:$0xff]
      %v562 = vld [vmem:[#allocation2 + $0x38] sm:$0xff]
      %v563 = vld [vmem:[#allocation2 + $0x40] sm:$0xff]
      %v564 = vld [vmem:[#allocation2 + $0x48] sm:$0xff]
      %v565 = vld [vmem:[#allocation2 + $0x50] sm:$0xff]
      %v566 = vld [vmem:[#allocation2 + $0x58] sm:$0xff]
      %v567 = vld [vmem:[#allocation2 + $0x60] sm:$0xff]
      %v568 = vld [vmem:[#allocation2 + $0x68] sm:$0xff]
      %v569 = vld [vmem:[#allocation2 + $0x70] sm:$0xff]
      %v570 = vld [vmem:[#allocation2 + $0x78] sm:$0xff]
      %v571 = vld [vmem:[#allocation2 + $0x80] sm:$0xff]
      %v572 = vld [vmem:[#allocation2 + $0x88] sm:$0xff]
      %v573 = vld [vmem:[#allocation2 + $0x90] sm:$0xff]
      %v574 = vld [vmem:[#allocation2 + $0x98] sm:$0xff]
      %v575 = vld [vmem:[#allocation2 + $0xa0] sm:$0xff]
      %v576 = vld [vmem:[#allocation2 + $0xa8] sm:$0xff]
      %v577 = vld [vmem:[#allocation2 + $0xb0] sm:$0xff]
      %v578 = vld [vmem:[#allocation2 + $0xb8] sm:$0xff]
      %v579 = vld [vmem:[#allocation2 + $0xc0] sm:$0xff]
      %v580 = vld [vmem:[#allocation2 + $0xc8] sm:$0xff]
      %v581 = vld [vmem:[#allocation2 + $0xd0] sm:$0xff]
      %v582 = vld [vmem:[#allocation2 + $0xd8] sm:$0xff]
      %v583 = vld [vmem:[#allocation2 + $0xe0] sm:$0xff]
      %v584 = vld [vmem:[#allocation2 + $0xe8] sm:$0xff]
      %v585 = vld [vmem:[#allocation2 + $0xf0] sm:$0xff]
      %v586 = vld [vmem:[#allocation2 + $0xf8] sm:$0xff]
      %v587 = vld [vmem:[#allocation2 + $0x100] sm:$0xff]
      %v588 = vld [vmem:[#allocation2 + $0x108] sm:$0xff]
      %v589 = vld [vmem:[#allocation2 + $0x110] sm:$0xff]
      %v590 = vld [vmem:[#allocation2 + $0x118] sm:$0xff]
      %v591 = vld [vmem:[#allocation2 + $0x120] sm:$0xff]
      %v592 = vld [vmem:[#allocation2 + $0x128] sm:$0xff]
      %v593 = vld [vmem:[#allocation2 + $0x130] sm:$0xff]
      %v594 = vld [vmem:[#allocation2 + $0x138] sm:$0xff]
      %v595 = vld [vmem:[#allocation2 + $0x140] sm:$0xff]
      %v596 = vld [vmem:[#allocation2 + $0x148] sm:$0xff]
      %v597 = vld [vmem:[#allocation2 + $0x150] sm:$0xff]
      %v598 = vld [vmem:[#allocation2 + $0x158] sm:$0xff]
      %v599 = vld [vmem:[#allocation2 + $0x160] sm:$0xff]
      %v600 = vld [vmem:[#allocation2 + $0x168] sm:$0xff]
      %v601 = vld [vmem:[#allocation2 + $0x170] sm:$0xff]
      %v602 = vld [vmem:[#allocation2 + $0x178] sm:$0xff]
      %v603 = vld [vmem:[#allocation2 + $0x180] sm:$0xff]
      %v604 = vld [vmem:[#allocation2 + $0x188] sm:$0xff]
      %v605 = vld [vmem:[#allocation2 + $0x190] sm:$0xff]
      %v606 = vld [vmem:[#allocation2 + $0x198] sm:$0xff]
      %v607 = vld [vmem:[#allocation2 + $0x1a0] sm:$0xff]
      %v608 = vld [vmem:[#allocation2 + $0x1a8] sm:$0xff]
      %v609 = vld [vmem:[#allocation2 + $0x1b0] sm:$0xff]
      %v610 = vld [vmem:[#allocation2 + $0x1b8] sm:$0xff]
      %v611 = vld [vmem:[#allocation2 + $0x1c0] sm:$0xff]
      %v612 = vld [vmem:[#allocation2 + $0x1c8] sm:$0xff]
      %v613 = vld [vmem:[#allocation2 + $0x1d0] sm:$0xff]
      %v614 = vld [vmem:[#allocation2 + $0x1d8] sm:$0xff]
      %v615 = vld [vmem:[#allocation2 + $0x1e0] sm:$0xff]
      %v616 = vld [vmem:[#allocation2 + $0x1e8] sm:$0xff]
      %v617 = vld [vmem:[#allocation2 + $0x1f0] sm:$0xff]
      %v618 = vld [vmem:[#allocation2 + $0x1f8] sm:$0xff]
      %v619 = vadd.f32 %v555, %v228
      %v620 = vadd.f32 %v556, %v230
      %v621 = vadd.f32 %v557, %v389
      %v622 = vadd.f32 %v558, %v391
      %v623 = vadd.f32 %v559, %v234
      %v624 = vadd.f32 %v560, %v236
      %v625 = vadd.f32 %v561, %v395
      %v626 = vadd.f32 %v562, %v397
      %v627 = vadd.f32 %v563, %v240
      %v628 = vadd.f32 %v564, %v242
      %v629 = vadd.f32 %v565, %v401
      %v630 = vadd.f32 %v566, %v403
      %v631 = vadd.f32 %v567, %v246
      %v632 = vadd.f32 %v568, %v248
      %v633 = vadd.f32 %v569, %v407
      %v634 = vadd.f32 %v570, %v409
      %v635 = vadd.f32 %v571, %v252
      %v636 = vadd.f32 %v572, %v254
      %v637 = vadd.f32 %v573, %v413
      %v638 = vadd.f32 %v574, %v415
      %v639 = vadd.f32 %v575, %v258
      %v640 = vadd.f32 %v576, %v260
      %v641 = vadd.f32 %v577, %v419
      %v642 = vadd.f32 %v578, %v421
      %v643 = vadd.f32 %v579, %v264
      %v644 = vadd.f32 %v580, %v266
      %v645 = vadd.f32 %v581, %v425
      %v646 = vadd.f32 %v582, %v427
      %v647 = vadd.f32 %v583, %v270
      %v648 = vadd.f32 %v584, %v272
      %v649 = vadd.f32 %v585, %v431
      %v650 = vadd.f32 %v586, %v433
      %v651 = vadd.f32 %v587, %v276
      %v652 = vadd.f32 %v588, %v278
      %v653 = vadd.f32 %v589, %v437
      %v654 = vadd.f32 %v590, %v439
      %v655 = vadd.f32 %v591, %v282
      %v656 = vadd.f32 %v592, %v284
      %v657 = vadd.f32 %v593, %v443
      %v658 = vadd.f32 %v594, %v445
      %v659 = vadd.f32 %v595, %v288
      %v660 = vadd.f32 %v596, %v290
      %v661 = vadd.f32 %v597, %v449
      %v662 = vadd.f32 %v598, %v451
      %v663 = vadd.f32 %v599, %v294
      %v664 = vadd.f32 %v600, %v296
      %v665 = vadd.f32 %v601, %v455
      %v666 = vadd.f32 %v602, %v457
      %v667 = vadd.f32 %v603, %v300
      %v668 = vadd.f32 %v604, %v302
      %v669 = vadd.f32 %v605, %v461
      %v670 = vadd.f32 %v606, %v463
      %v671 = vadd.f32 %v607, %v306
      %v672 = vadd.f32 %v608, %v308
      %v673 = vadd.f32 %v609, %v467
      %v674 = vadd.f32 %v610, %v469
      %v675 = vadd.f32 %v611, %v312
      %v676 = vadd.f32 %v612, %v314
      %v677 = vadd.f32 %v613, %v473
      %v678 = vadd.f32 %v614, %v475
      %v679 = vadd.f32 %v615, %v318
      %v680 = vadd.f32 %v616, %v320
      %v681 = vadd.f32 %v617, %v479
      %v682 = vadd.f32 %v618, %v481
      %683 = vst [vmem:[#allocation2] sm:$0xff] %v619
      %684 = vst [vmem:[#allocation2 + $0x8] sm:$0xff] %v620
      %685 = vst [vmem:[#allocation2 + $0x10] sm:$0xff] %v621
      %686 = vst [vmem:[#allocation2 + $0x18] sm:$0xff] %v622
      %687 = vst [vmem:[#allocation2 + $0x20] sm:$0xff] %v623
      %688 = vst [vmem:[#allocation2 + $0x28] sm:$0xff] %v624
      %689 = vst [vmem:[#allocation2 + $0x30] sm:$0xff] %v625
      %690 = vst [vmem:[#allocation2 + $0x38] sm:$0xff] %v626
      %691 = vst [vmem:[#allocation2 + $0x40] sm:$0xff] %v627
      %692 = vst [vmem:[#allocation2 + $0x48] sm:$0xff] %v628
      %693 = vst [vmem:[#allocation2 + $0x50] sm:$0xff] %v629
      %694 = vst [vmem:[#allocation2 + $0x58] sm:$0xff] %v630
      %695 = vst [vmem:[#allocation2 + $0x60] sm:$0xff] %v631
      %696 = vst [vmem:[#allocation2 + $0x68] sm:$0xff] %v632
      %697 = vst [vmem:[#allocation2 + $0x70] sm:$0xff] %v633
      %698 = vst [vmem:[#allocation2 + $0x78] sm:$0xff] %v634
      %699 = vst [vmem:[#allocation2 + $0x80] sm:$0xff] %v635
      %700 = vst [vmem:[#allocation2 + $0x88] sm:$0xff] %v636
      %701 = vst [vmem:[#allocation2 + $0x90] sm:$0xff] %v637
      %702 = vst [vmem:[#allocation2 + $0x98] sm:$0xff] %v638
      %703 = vst [vmem:[#allocation2 + $0xa0] sm:$0xff] %v639
      %704 = vst [vmem:[#allocation2 + $0xa8] sm:$0xff] %v640
      %705 = vst [vmem:[#allocation2 + $0xb0] sm:$0xff] %v641
      %706 = vst [vmem:[#allocation2 + $0xb8] sm:$0xff] %v642
      %707 = vst [vmem:[#allocation2 + $0xc0] sm:$0xff] %v643
      %708 = vst [vmem:[#allocation2 + $0xc8] sm:$0xff] %v644
      %709 = vst [vmem:[#allocation2 + $0xd0] sm:$0xff] %v645
      %710 = vst [vmem:[#allocation2 + $0xd8] sm:$0xff] %v646
      %711 = vst [vmem:[#allocation2 + $0xe0] sm:$0xff] %v647
      %712 = vst [vmem:[#allocation2 + $0xe8] sm:$0xff] %v648
      %713 = vst [vmem:[#allocation2 + $0xf0] sm:$0xff] %v649
      %714 = vst [vmem:[#allocation2 + $0xf8] sm:$0xff] %v650
      %715 = vst [vmem:[#allocation2 + $0x100] sm:$0xff] %v651
      %716 = vst [vmem:[#allocation2 + $0x108] sm:$0xff] %v652
      %717 = vst [vmem:[#allocation2 + $0x110] sm:$0xff] %v653
      %718 = vst [vmem:[#allocation2 + $0x118] sm:$0xff] %v654
      %719 = vst [vmem:[#allocation2 + $0x120] sm:$0xff] %v655
      %720 = vst [vmem:[#allocation2 + $0x128] sm:$0xff] %v656
      %721 = vst [vmem:[#allocation2 + $0x130] sm:$0xff] %v657
      %722 = vst [vmem:[#allocation2 + $0x138] sm:$0xff] %v658
      %723 = vst [vmem:[#allocation2 + $0x140] sm:$0xff] %v659
      %724 = vst [vmem:[#allocation2 + $0x148] sm:$0xff] %v660
      %725 = vst [vmem:[#allocation2 + $0x150] sm:$0xff] %v661
      %726 = vst [vmem:[#allocation2 + $0x158] sm:$0xff] %v662
      %727 = vst [vmem:[#allocation2 + $0x160] sm:$0xff] %v663
      %728 = vst [vmem:[#allocation2 + $0x168] sm:$0xff] %v664
      %729 = vst [vmem:[#allocation2 + $0x170] sm:$0xff] %v665
      %730 = vst [vmem:[#allocation2 + $0x178] sm:$0xff] %v666
      %731 = vst [vmem:[#allocation2 + $0x180] sm:$0xff] %v667
      %732 = vst [vmem:[#allocation2 + $0x188] sm:$0xff] %v668
      %733 = vst [vmem:[#allocation2 + $0x190] sm:$0xff] %v669
      %734 = vst [vmem:[#allocation2 + $0x198] sm:$0xff] %v670
      %735 = vst [vmem:[#allocation2 + $0x1a0] sm:$0xff] %v671
      %736 = vst [vmem:[#allocation2 + $0x1a8] sm:$0xff] %v672
      %737 = vst [vmem:[#allocation2 + $0x1b0] sm:$0xff] %v673
      %738 = vst [vmem:[#allocation2 + $0x1b8] sm:$0xff] %v674
      %739 = vst [vmem:[#allocation2 + $0x1c0] sm:$0xff] %v675
      %740 = vst [vmem:[#allocation2 + $0x1c8] sm:$0xff] %v676
      %741 = vst [vmem:[#allocation2 + $0x1d0] sm:$0xff] %v677
      %742 = vst [vmem:[#allocation2 + $0x1d8] sm:$0xff] %v678
      %743 = vst [vmem:[#allocation2 + $0x1e0] sm:$0xff] %v679
      %744 = vst [vmem:[#allocation2 + $0x1e8] sm:$0xff] %v680
      %745 = vst [vmem:[#allocation2 + $0x1f0] sm:$0xff] %v681
      %746 = vst [vmem:[#allocation2 + $0x1f8] sm:$0xff] %v682
    $region77: #{tpu_custom_call.1} parent=1 // pred_fallthru
      _
    // Predicated region
    $region78: #{tpu_custom_call.1} parent=1 // pred_check
      %p747 = pneg %p483
    $region79: #{tpu_custom_call.1} parent=1 // pred_check_branch
      %749 = sbr.rel (%p747) target = $region81
    $region80: #{tpu_custom_call.1} parent=1 // pred_region
      %v750 = vld [vmem:[#allocation2] sm:$0xff]
      %v751 = vld [vmem:[#allocation2 + $0x8] sm:$0xff]
      %v752 = vld [vmem:[#allocation2 + $0x10] sm:$0xff]
      %v753 = vld [vmem:[#allocation2 + $0x18] sm:$0xff]
      %v754 = vld [vmem:[#allocation2 + $0x20] sm:$0xff]
      %v755 = vld [vmem:[#allocation2 + $0x28] sm:$0xff]
      %v756 = vld [vmem:[#allocation2 + $0x30] sm:$0xff]
      %v757 = vld [vmem:[#allocation2 + $0x38] sm:$0xff]
      %v758 = vld [vmem:[#allocation2 + $0x40] sm:$0xff]
      %v759 = vld [vmem:[#allocation2 + $0x48] sm:$0xff]
      %v760 = vld [vmem:[#allocation2 + $0x50] sm:$0xff]
      %v761 = vld [vmem:[#allocation2 + $0x58] sm:$0xff]
      %v762 = vld [vmem:[#allocation2 + $0x60] sm:$0xff]
      %v763 = vld [vmem:[#allocation2 + $0x68] sm:$0xff]
      %v764 = vld [vmem:[#allocation2 + $0x70] sm:$0xff]
      %v765 = vld [vmem:[#allocation2 + $0x78] sm:$0xff]
      %v766 = vld [vmem:[#allocation2 + $0x80] sm:$0xff]
      %v767 = vld [vmem:[#allocation2 + $0x88] sm:$0xff]
      %v768 = vld [vmem:[#allocation2 + $0x90] sm:$0xff]
      %v769 = vld [vmem:[#allocation2 + $0x98] sm:$0xff]
      %v770 = vld [vmem:[#allocation2 + $0xa0] sm:$0xff]
      %v771 = vld [vmem:[#allocation2 + $0xa8] sm:$0xff]
      %v772 = vld [vmem:[#allocation2 + $0xb0] sm:$0xff]
      %v773 = vld [vmem:[#allocation2 + $0xb8] sm:$0xff]
      %v774 = vld [vmem:[#allocation2 + $0xc0] sm:$0xff]
      %v775 = vld [vmem:[#allocation2 + $0xc8] sm:$0xff]
      %v776 = vld [vmem:[#allocation2 + $0xd0] sm:$0xff]
      %v777 = vld [vmem:[#allocation2 + $0xd8] sm:$0xff]
      %v778 = vld [vmem:[#allocation2 + $0xe0] sm:$0xff]
      %v779 = vld [vmem:[#allocation2 + $0xe8] sm:$0xff]
      %v780 = vld [vmem:[#allocation2 + $0xf0] sm:$0xff]
      %v781 = vld [vmem:[#allocation2 + $0xf8] sm:$0xff]
      %v782 = vld [vmem:[#allocation2 + $0x100] sm:$0xff]
      %v783 = vld [vmem:[#allocation2 + $0x108] sm:$0xff]
      %v784 = vld [vmem:[#allocation2 + $0x110] sm:$0xff]
      %v785 = vld [vmem:[#allocation2 + $0x118] sm:$0xff]
      %v786 = vld [vmem:[#allocation2 + $0x120] sm:$0xff]
      %v787 = vld [vmem:[#allocation2 + $0x128] sm:$0xff]
      %v788 = vld [vmem:[#allocation2 + $0x130] sm:$0xff]
      %v789 = vld [vmem:[#allocation2 + $0x138] sm:$0xff]
      %v790 = vld [vmem:[#allocation2 + $0x140] sm:$0xff]
      %v791 = vld [vmem:[#allocation2 + $0x148] sm:$0xff]
      %v792 = vld [vmem:[#allocation2 + $0x150] sm:$0xff]
      %v793 = vld [vmem:[#allocation2 + $0x158] sm:$0xff]
      %v794 = vld [vmem:[#allocation2 + $0x160] sm:$0xff]
      %v795 = vld [vmem:[#allocation2 + $0x168] sm:$0xff]
      %v796 = vld [vmem:[#allocation2 + $0x170] sm:$0xff]
      %v797 = vld [vmem:[#allocation2 + $0x178] sm:$0xff]
      %v798 = vld [vmem:[#allocation2 + $0x180] sm:$0xff]
      %v799 = vld [vmem:[#allocation2 + $0x188] sm:$0xff]
      %v800 = vld [vmem:[#allocation2 + $0x190] sm:$0xff]
      %v801 = vld [vmem:[#allocation2 + $0x198] sm:$0xff]
      %v802 = vld [vmem:[#allocation2 + $0x1a0] sm:$0xff]
      %v803 = vld [vmem:[#allocation2 + $0x1a8] sm:$0xff]
      %v804 = vld [vmem:[#allocation2 + $0x1b0] sm:$0xff]
      %v805 = vld [vmem:[#allocation2 + $0x1b8] sm:$0xff]
      %v806 = vld [vmem:[#allocation2 + $0x1c0] sm:$0xff]
      %v807 = vld [vmem:[#allocation2 + $0x1c8] sm:$0xff]
      %v808 = vld [vmem:[#allocation2 + $0x1d0] sm:$0xff]
      %v809 = vld [vmem:[#allocation2 + $0x1d8] sm:$0xff]
      %v810 = vld [vmem:[#allocation2 + $0x1e0] sm:$0xff]
      %v811 = vld [vmem:[#allocation2 + $0x1e8] sm:$0xff]
      %v812 = vld [vmem:[#allocation2 + $0x1f0] sm:$0xff]
      %v813 = vld [vmem:[#allocation2 + $0x1f8] sm:$0xff]
      %v814 = vld [vmem:[%s3] sm:$0xf]
      %v816 = vlaneseq
      %v817 = vshrl.u32 %v816, 7
      %v818 = vsub.s32 0, %v817
      %v819 = vrot.slane %v814, %v818
      %v820 = vlaneseq
      %v821 = vshrl.u32 %v820, 7
      %v822 = vsub.s32 1, %v821
      %v823 = vrot.slane %v814, %v822
      %v824 = vlaneseq
      %v825 = vshrl.u32 %v824, 7
      %v826 = vsub.s32 2, %v825
      %v827 = vrot.slane %v814, %v826
      %v828 = vlaneseq
      %v829 = vshrl.u32 %v828, 7
      %v830 = vsub.s32 3, %v829
      %v831 = vrot.slane %v814, %v830
      %v836 = vadd.f32 %v750, %v819
      %v837 = vadd.f32 %v751, %v823
      %v838 = vadd.f32 %v752, %v827
      %v839 = vadd.f32 %v753, %v831
      %v840 = vadd.f32 %v754, %v819
      %v841 = vadd.f32 %v755, %v823
      %v842 = vadd.f32 %v756, %v827
      %v843 = vadd.f32 %v757, %v831
      %v844 = vadd.f32 %v758, %v819
      %v845 = vadd.f32 %v759, %v823
      %v846 = vadd.f32 %v760, %v827
      %v847 = vadd.f32 %v761, %v831
      %v848 = vadd.f32 %v762, %v819
      %v849 = vadd.f32 %v763, %v823
      %v850 = vadd.f32 %v764, %v827
      %v851 = vadd.f32 %v765, %v831
      %v852 = vadd.f32 %v766, %v819
      %v853 = vadd.f32 %v767, %v823
      %v854 = vadd.f32 %v768, %v827
      %v855 = vadd.f32 %v769, %v831
      %v856 = vadd.f32 %v770, %v819
      %v857 = vadd.f32 %v771, %v823
      %v858 = vadd.f32 %v772, %v827
      %v859 = vadd.f32 %v773, %v831
      %v860 = vadd.f32 %v774, %v819
      %v861 = vadd.f32 %v775, %v823
      %v862 = vadd.f32 %v776, %v827
      %v863 = vadd.f32 %v777, %v831
      %v864 = vadd.f32 %v778, %v819
      %v865 = vadd.f32 %v779, %v823
      %v866 = vadd.f32 %v780, %v827
      %v867 = vadd.f32 %v781, %v831
      %v868 = vadd.f32 %v782, %v819
      %v869 = vadd.f32 %v783, %v823
      %v870 = vadd.f32 %v784, %v827
      %v871 = vadd.f32 %v785, %v831
      %v872 = vadd.f32 %v786, %v819
      %v873 = vadd.f32 %v787, %v823
      %v874 = vadd.f32 %v788, %v827
      %v875 = vadd.f32 %v789, %v831
      %v876 = vadd.f32 %v790, %v819
      %v877 = vadd.f32 %v791, %v823
      %v878 = vadd.f32 %v792, %v827
      %v879 = vadd.f32 %v793, %v831
      %v880 = vadd.f32 %v794, %v819
      %v881 = vadd.f32 %v795, %v823
      %v882 = vadd.f32 %v796, %v827
      %v883 = vadd.f32 %v797, %v831
      %v884 = vadd.f32 %v798, %v819
      %v885 = vadd.f32 %v799, %v823
      %v886 = vadd.f32 %v800, %v827
      %v887 = vadd.f32 %v801, %v831
      %v888 = vadd.f32 %v802, %v819
      %v889 = vadd.f32 %v803, %v823
      %v890 = vadd.f32 %v804, %v827
      %v891 = vadd.f32 %v805, %v831
      %v892 = vadd.f32 %v806, %v819
      %v893 = vadd.f32 %v807, %v823
      %v894 = vadd.f32 %v808, %v827
      %v895 = vadd.f32 %v809, %v831
      %v896 = vadd.f32 %v810, %v819
      %v897 = vadd.f32 %v811, %v823
      %v898 = vadd.f32 %v812, %v827
      %v899 = vadd.f32 %v813, %v831
      %v900 = vmax.f32 %v836, 0.0
      %v901 = vmax.f32 %v837, 0.0
      %v902 = vmax.f32 %v838, 0.0
      %v903 = vmax.f32 %v839, 0.0
      %v904 = vmax.f32 %v840, 0.0
      %v905 = vmax.f32 %v841, 0.0
      %v906 = vmax.f32 %v842, 0.0
      %v907 = vmax.f32 %v843, 0.0
      %v908 = vmax.f32 %v844, 0.0
      %v909 = vmax.f32 %v845, 0.0
      %v910 = vmax.f32 %v846, 0.0
      %v911 = vmax.f32 %v847, 0.0
      %v912 = vmax.f32 %v848, 0.0
      %v913 = vmax.f32 %v849, 0.0
      %v914 = vmax.f32 %v850, 0.0
      %v915 = vmax.f32 %v851, 0.0
      %v916 = vmax.f32 %v852, 0.0
      %v917 = vmax.f32 %v853, 0.0
      %v918 = vmax.f32 %v854, 0.0
      %v919 = vmax.f32 %v855, 0.0
      %v920 = vmax.f32 %v856, 0.0
      %v921 = vmax.f32 %v857, 0.0
      %v922 = vmax.f32 %v858, 0.0
      %v923 = vmax.f32 %v859, 0.0
      %v924 = vmax.f32 %v860, 0.0
      %v925 = vmax.f32 %v861, 0.0
      %v926 = vmax.f32 %v862, 0.0
      %v927 = vmax.f32 %v863, 0.0
      %v928 = vmax.f32 %v864, 0.0
      %v929 = vmax.f32 %v865, 0.0
      %v930 = vmax.f32 %v866, 0.0
      %v931 = vmax.f32 %v867, 0.0
      %v932 = vmax.f32 %v868, 0.0
      %v933 = vmax.f32 %v869, 0.0
      %v934 = vmax.f32 %v870, 0.0
      %v935 = vmax.f32 %v871, 0.0
      %v936 = vmax.f32 %v872, 0.0
      %v937 = vmax.f32 %v873, 0.0
      %v938 = vmax.f32 %v874, 0.0
      %v939 = vmax.f32 %v875, 0.0
      %v940 = vmax.f32 %v876, 0.0
      %v941 = vmax.f32 %v877, 0.0
      %v942 = vmax.f32 %v878, 0.0
      %v943 = vmax.f32 %v879, 0.0
      %v944 = vmax.f32 %v880, 0.0
      %v945 = vmax.f32 %v881, 0.0
      %v946 = vmax.f32 %v882, 0.0
      %v947 = vmax.f32 %v883, 0.0
      %v948 = vmax.f32 %v884, 0.0
      %v949 = vmax.f32 %v885, 0.0
      %v950 = vmax.f32 %v886, 0.0
      %v951 = vmax.f32 %v887, 0.0
      %v952 = vmax.f32 %v888, 0.0
      %v953 = vmax.f32 %v889, 0.0
      %v954 = vmax.f32 %v890, 0.0
      %v955 = vmax.f32 %v891, 0.0
      %v956 = vmax.f32 %v892, 0.0
      %v957 = vmax.f32 %v893, 0.0
      %v958 = vmax.f32 %v894, 0.0
      %v959 = vmax.f32 %v895, 0.0
      %v960 = vmax.f32 %v896, 0.0
      %v961 = vmax.f32 %v897, 0.0
      %v962 = vmax.f32 %v898, 0.0
      %v963 = vmax.f32 %v899, 0.0
      %v964 = vld [vmem:[#allocation7] sm:$0xff]
      %v965 = vld [vmem:[#allocation7 + $0x8] sm:$0xff]
      %v966 = vld [vmem:[#allocation7 + $0x10] sm:$0xff]
      %v967 = vld [vmem:[#allocation7 + $0x18] sm:$0xff]
      %v968 = vld [vmem:[#allocation7 + $0x20] sm:$0xff]
      %v969 = vld [vmem:[#allocation7 + $0x28] sm:$0xff]
      %v970 = vld [vmem:[#allocation7 + $0x30] sm:$0xff]
      %v971 = vld [vmem:[#allocation7 + $0x38] sm:$0xff]
      %v972 = vld [vmem:[#allocation7 + $0x40] sm:$0xff]
      %v973 = vld [vmem:[#allocation7 + $0x48] sm:$0xff]
      %v974 = vld [vmem:[#allocation7 + $0x50] sm:$0xff]
      %v975 = vld [vmem:[#allocation7 + $0x58] sm:$0xff]
      %v976 = vld [vmem:[#allocation7 + $0x60] sm:$0xff]
      %v977 = vld [vmem:[#allocation7 + $0x68] sm:$0xff]
      %v978 = vld [vmem:[#allocation7 + $0x70] sm:$0xff]
      %v979 = vld [vmem:[#allocation7 + $0x78] sm:$0xff]
      %v980 = vld [vmem:[#allocation7 + $0x80] sm:$0xff]
      %v981 = vld [vmem:[#allocation7 + $0x88] sm:$0xff]
      %v982 = vld [vmem:[#allocation7 + $0x90] sm:$0xff]
      %v983 = vld [vmem:[#allocation7 + $0x98] sm:$0xff]
      %v984 = vld [vmem:[#allocation7 + $0xa0] sm:$0xff]
      %v985 = vld [vmem:[#allocation7 + $0xa8] sm:$0xff]
      %v986 = vld [vmem:[#allocation7 + $0xb0] sm:$0xff]
      %v987 = vld [vmem:[#allocation7 + $0xb8] sm:$0xff]
      %v988 = vld [vmem:[#allocation7 + $0xc0] sm:$0xff]
      %v989 = vld [vmem:[#allocation7 + $0xc8] sm:$0xff]
      %v990 = vld [vmem:[#allocation7 + $0xd0] sm:$0xff]
      %v991 = vld [vmem:[#allocation7 + $0xd8] sm:$0xff]
      %v992 = vld [vmem:[#allocation7 + $0xe0] sm:$0xff]
      %v993 = vld [vmem:[#allocation7 + $0xe8] sm:$0xff]
      %v994 = vld [vmem:[#allocation7 + $0xf0] sm:$0xff]
      %v995 = vld [vmem:[#allocation7 + $0xf8] sm:$0xff]
      %v996 = vld [vmem:[#allocation7 + $0x100] sm:$0xff]
      %v997 = vld [vmem:[#allocation7 + $0x108] sm:$0xff]
      %v998 = vld [vmem:[#allocation7 + $0x110] sm:$0xff]
      %v999 = vld [vmem:[#allocation7 + $0x118] sm:$0xff]
      %v1000 = vld [vmem:[#allocation7 + $0x120] sm:$0xff]
      %v1001 = vld [vmem:[#allocation7 + $0x128] sm:$0xff]
      %v1002 = vld [vmem:[#allocation7 + $0x130] sm:$0xff]
      %v1003 = vld [vmem:[#allocation7 + $0x138] sm:$0xff]
      %v1004 = vld [vmem:[#allocation7 + $0x140] sm:$0xff]
      %v1005 = vld [vmem:[#allocation7 + $0x148] sm:$0xff]
      %v1006 = vld [vmem:[#allocation7 + $0x150] sm:$0xff]
      %v1007 = vld [vmem:[#allocation7 + $0x158] sm:$0xff]
      %v1008 = vld [vmem:[#allocation7 + $0x160] sm:$0xff]
      %v1009 = vld [vmem:[#allocation7 + $0x168] sm:$0xff]
      %v1010 = vld [vmem:[#allocation7 + $0x170] sm:$0xff]
      %v1011 = vld [vmem:[#allocation7 + $0x178] sm:$0xff]
      %v1012 = vld [vmem:[#allocation7 + $0x180] sm:$0xff]
      %v1013 = vld [vmem:[#allocation7 + $0x188] sm:$0xff]
      %v1014 = vld [vmem:[#allocation7 + $0x190] sm:$0xff]
      %v1015 = vld [vmem:[#allocation7 + $0x198] sm:$0xff]
      %v1016 = vld [vmem:[#allocation7 + $0x1a0] sm:$0xff]
      %v1017 = vld [vmem:[#allocation7 + $0x1a8] sm:$0xff]
      %v1018 = vld [vmem:[#allocation7 + $0x1b0] sm:$0xff]
      %v1019 = vld [vmem:[#allocation7 + $0x1b8] sm:$0xff]
      %v1020 = vld [vmem:[#allocation7 + $0x1c0] sm:$0xff]
      %v1021 = vld [vmem:[#allocation7 + $0x1c8] sm:$0xff]
      %v1022 = vld [vmem:[#allocation7 + $0x1d0] sm:$0xff]
      %v1023 = vld [vmem:[#allocation7 + $0x1d8] sm:$0xff]
      %v1024 = vld [vmem:[#allocation7 + $0x1e0] sm:$0xff]
      %v1025 = vld [vmem:[#allocation7 + $0x1e8] sm:$0xff]
      %v1026 = vld [vmem:[#allocation7 + $0x1f0] sm:$0xff]
      %v1027 = vld [vmem:[#allocation7 + $0x1f8] sm:$0xff]
      %v1028 = vld [vmem:[#allocation7 + $0x200] sm:$0xff]
      %v1029 = vld [vmem:[#allocation7 + $0x208] sm:$0xff]
      %v1030 = vld [vmem:[#allocation7 + $0x210] sm:$0xff]
      %v1031 = vld [vmem:[#allocation7 + $0x218] sm:$0xff]
      %v1032 = vld [vmem:[#allocation7 + $0x220] sm:$0xff]
      %v1033 = vld [vmem:[#allocation7 + $0x228] sm:$0xff]
      %v1034 = vld [vmem:[#allocation7 + $0x230] sm:$0xff]
      %v1035 = vld [vmem:[#allocation7 + $0x238] sm:$0xff]
      %v1036 = vld [vmem:[#allocation7 + $0x240] sm:$0xff]
      %v1037 = vld [vmem:[#allocation7 + $0x248] sm:$0xff]
      %v1038 = vld [vmem:[#allocation7 + $0x250] sm:$0xff]
      %v1039 = vld [vmem:[#allocation7 + $0x258] sm:$0xff]
      %v1040 = vld [vmem:[#allocation7 + $0x260] sm:$0xff]
      %v1041 = vld [vmem:[#allocation7 + $0x268] sm:$0xff]
      %v1042 = vld [vmem:[#allocation7 + $0x270] sm:$0xff]
      %v1043 = vld [vmem:[#allocation7 + $0x278] sm:$0xff]
      %v1044 = vld [vmem:[#allocation7 + $0x280] sm:$0xff]
      %v1045 = vld [vmem:[#allocation7 + $0x288] sm:$0xff]
      %v1046 = vld [vmem:[#allocation7 + $0x290] sm:$0xff]
      %v1047 = vld [vmem:[#allocation7 + $0x298] sm:$0xff]
      %v1048 = vld [vmem:[#allocation7 + $0x2a0] sm:$0xff]
      %v1049 = vld [vmem:[#allocation7 + $0x2a8] sm:$0xff]
      %v1050 = vld [vmem:[#allocation7 + $0x2b0] sm:$0xff]
      %v1051 = vld [vmem:[#allocation7 + $0x2b8] sm:$0xff]
      %v1052 = vld [vmem:[#allocation7 + $0x2c0] sm:$0xff]
      %v1053 = vld [vmem:[#allocation7 + $0x2c8] sm:$0xff]
      %v1054 = vld [vmem:[#allocation7 + $0x2d0] sm:$0xff]
      %v1055 = vld [vmem:[#allocation7 + $0x2d8] sm:$0xff]
      %v1056 = vld [vmem:[#allocation7 + $0x2e0] sm:$0xff]
      %v1057 = vld [vmem:[#allocation7 + $0x2e8] sm:$0xff]
      %v1058 = vld [vmem:[#allocation7 + $0x2f0] sm:$0xff]
      %v1059 = vld [vmem:[#allocation7 + $0x2f8] sm:$0xff]
      %v1060 = vld [vmem:[#allocation7 + $0x300] sm:$0xff]
      %v1061 = vld [vmem:[#allocation7 + $0x308] sm:$0xff]
      %v1062 = vld [vmem:[#allocation7 + $0x310] sm:$0xff]
      %v1063 = vld [vmem:[#allocation7 + $0x318] sm:$0xff]
      %v1064 = vld [vmem:[#allocation7 + $0x320] sm:$0xff]
      %v1065 = vld [vmem:[#allocation7 + $0x328] sm:$0xff]
      %v1066 = vld [vmem:[#allocation7 + $0x330] sm:$0xff]
      %v1067 = vld [vmem:[#allocation7 + $0x338] sm:$0xff]
      %v1068 = vld [vmem:[#allocation7 + $0x340] sm:$0xff]
      %v1069 = vld [vmem:[#allocation7 + $0x348] sm:$0xff]
      %v1070 = vld [vmem:[#allocation7 + $0x350] sm:$0xff]
      %v1071 = vld [vmem:[#allocation7 + $0x358] sm:$0xff]
      %v1072 = vld [vmem:[#allocation7 + $0x360] sm:$0xff]
      %v1073 = vld [vmem:[#allocation7 + $0x368] sm:$0xff]
      %v1074 = vld [vmem:[#allocation7 + $0x370] sm:$0xff]
      %v1075 = vld [vmem:[#allocation7 + $0x378] sm:$0xff]
      %v1076 = vld [vmem:[#allocation7 + $0x380] sm:$0xff]
      %v1077 = vld [vmem:[#allocation7 + $0x388] sm:$0xff]
      %v1078 = vld [vmem:[#allocation7 + $0x390] sm:$0xff]
      %v1079 = vld [vmem:[#allocation7 + $0x398] sm:$0xff]
      %v1080 = vld [vmem:[#allocation7 + $0x3a0] sm:$0xff]
      %v1081 = vld [vmem:[#allocation7 + $0x3a8] sm:$0xff]
      %v1082 = vld [vmem:[#allocation7 + $0x3b0] sm:$0xff]
      %v1083 = vld [vmem:[#allocation7 + $0x3b8] sm:$0xff]
      %v1084 = vld [vmem:[#allocation7 + $0x3c0] sm:$0xff]
      %v1085 = vld [vmem:[#allocation7 + $0x3c8] sm:$0xff]
      %v1086 = vld [vmem:[#allocation7 + $0x3d0] sm:$0xff]
      %v1087 = vld [vmem:[#allocation7 + $0x3d8] sm:$0xff]
      %v1088 = vld [vmem:[#allocation7 + $0x3e0] sm:$0xff]
      %v1089 = vld [vmem:[#allocation7 + $0x3e8] sm:$0xff]
      %v1090 = vld [vmem:[#allocation7 + $0x3f0] sm:$0xff]
      %v1091 = vld [vmem:[#allocation7 + $0x3f8] sm:$0xff]
      %v1092 = vld [vmem:[%s5] sm:$0x3]
      %v1094 = vlaneseq
      %v1095 = vshrl.u32 %v1094, 7
      %v1096 = vsub.s32 0, %v1095
      %v1097 = vrot.slane %v1092, %v1096
      %v1098 = vlaneseq
      %v1099 = vshrl.u32 %v1098, 7
      %v1100 = vsub.s32 1, %v1099
      %v1101 = vrot.slane %v1092, %v1100
      %1104 = vmatprep.subr.mxu0 %v965
      %1105 = vmatpush1.msra.mxu0 %v964
      %1106 = vmatprep.subr.mxu0 %v967
      %1107 = vmatpush1.msra.mxu0 %v966
      %1108 = vmatprep.subr.mxu0 %v969
      %1109 = vmatpush1.msra.mxu0 %v968
      %1110 = vmatprep.subr.mxu0 %v971
      %1111 = vmatpush1.msra.mxu0 %v970
      %1112 = vmatprep.subr.mxu0 %v973
      %1113 = vmatpush1.msra.mxu0 %v972
      %1114 = vmatprep.subr.mxu0 %v975
      %1115 = vmatpush1.msra.mxu0 %v974
      %1116 = vmatprep.subr.mxu0 %v977
      %1117 = vmatpush1.msra.mxu0 %v976
      %1118 = vmatprep.subr.mxu0 %v979
      %1119 = vmatpush1.msra.mxu0 %v978
      %1120 = vmatprep.subr.mxu0 %v981
      %1121 = vmatpush1.msra.mxu0 %v980
      %1122 = vmatprep.subr.mxu0 %v983
      %1123 = vmatpush1.msra.mxu0 %v982
      %1124 = vmatprep.subr.mxu0 %v985
      %1125 = vmatpush1.msra.mxu0 %v984
      %1126 = vmatprep.subr.mxu0 %v987
      %1127 = vmatpush1.msra.mxu0 %v986
      %1128 = vmatprep.subr.mxu0 %v989
      %1129 = vmatpush1.msra.mxu0 %v988
      %1130 = vmatprep.subr.mxu0 %v991
      %1131 = vmatpush1.msra.mxu0 %v990
      %1132 = vmatprep.subr.mxu0 %v993
      %1133 = vmatpush1.msra.mxu0 %v992
      %1134 = vmatprep.subr.mxu0 %v995
      %1135 = vmatpush1.msra.mxu0 %v994
      %1136 = vmatprep.subr.mxu0 %v997
      %1137 = vmatpush1.msra.mxu0 %v996
      %1138 = vmatprep.subr.mxu0 %v999
      %1139 = vmatpush1.msra.mxu0 %v998
      %1140 = vmatprep.subr.mxu0 %v1001
      %1141 = vmatpush1.msra.mxu0 %v1000
      %1142 = vmatprep.subr.mxu0 %v1003
      %1143 = vmatpush1.msra.mxu0 %v1002
      %1144 = vmatprep.subr.mxu0 %v1005
      %1145 = vmatpush1.msra.mxu0 %v1004
      %1146 = vmatprep.subr.mxu0 %v1007
      %1147 = vmatpush1.msra.mxu0 %v1006
      %1148 = vmatprep.subr.mxu0 %v1009
      %1149 = vmatpush1.msra.mxu0 %v1008
      %1150 = vmatprep.subr.mxu0 %v1011
      %1151 = vmatpush1.msra.mxu0 %v1010
      %1152 = vmatprep.subr.mxu0 %v1013
      %1153 = vmatpush1.msra.mxu0 %v1012
      %1154 = vmatprep.subr.mxu0 %v1015
      %1155 = vmatpush1.msra.mxu0 %v1014
      %1156 = vmatprep.subr.mxu0 %v1017
      %1157 = vmatpush1.msra.mxu0 %v1016
      %1158 = vmatprep.subr.mxu0 %v1019
      %1159 = vmatpush1.msra.mxu0 %v1018
      %1160 = vmatprep.subr.mxu0 %v1021
      %1161 = vmatpush1.msra.mxu0 %v1020
      %1162 = vmatprep.subr.mxu0 %v1023
      %1163 = vmatpush1.msra.mxu0 %v1022
      %1164 = vmatprep.subr.mxu0 %v1025
      %1165 = vmatpush1.msra.mxu0 %v1024
      %1166 = vmatprep.subr.mxu0 %v1027
      %1167 = vmatpush1.msra.mxu0 %v1026
      %1168 = vmatprep.mubr.f32.mxu0 %v901
      %1169 = vmatmul.mubr.f32.gmra.mrb[0].mxu0 %v900
      %v1170 = vpop.f32.mrb[0].mxu0
      %v1171 = vadd.f32 %v1097, %v1170
      %v1172 = vpop.f32.mrb[0].mxu0
      %v1173 = vadd.f32 %v1101, %v1172
      %1174 = vmatprep.mubr.f32.mxu0 %v905
      %1175 = vmatmul.mubr.f32.gmra.mrb[0].mxu0 %v904
      %v1176 = vpop.f32.mrb[0].mxu0
      %v1177 = vadd.f32 %v1097, %v1176
      %v1178 = vpop.f32.mrb[0].mxu0
      %v1179 = vadd.f32 %v1101, %v1178
      %1180 = vmatprep.mubr.f32.mxu0 %v909
      %1181 = vmatmul.mubr.f32.gmra.mrb[0].mxu0 %v908
      %v1182 = vpop.f32.mrb[0].mxu0
      %v1183 = vadd.f32 %v1097, %v1182
      %v1184 = vpop.f32.mrb[0].mxu0
      %v1185 = vadd.f32 %v1101, %v1184
      %1186 = vmatprep.mubr.f32.mxu0 %v913
      %1187 = vmatmul.mubr.f32.gmra.mrb[0].mxu0 %v912
      %v1188 = vpop.f32.mrb[0].mxu0
      %v1189 = vadd.f32 %v1097, %v1188
      %v1190 = vpop.f32.mrb[0].mxu0
      %v1191 = vadd.f32 %v1101, %v1190
      %1192 = vmatprep.mubr.f32.mxu0 %v917
      %1193 = vmatmul.mubr.f32.gmra.mrb[0].mxu0 %v916
      %v1194 = vpop.f32.mrb[0].mxu0
      %v1195 = vadd.f32 %v1097, %v1194
      %v1196 = vpop.f32.mrb[0].mxu0
      %v1197 = vadd.f32 %v1101, %v1196
      %1198 = vmatprep.mubr.f32.mxu0 %v921
      %1199 = vmatmul.mubr.f32.gmra.mrb[0].mxu0 %v920
      %v1200 = vpop.f32.mrb[0].mxu0
      %v1201 = vadd.f32 %v1097, %v1200
      %v1202 = vpop.f32.mrb[0].mxu0
      %v1203 = vadd.f32 %v1101, %v1202
      %1204 = vmatprep.mubr.f32.mxu0 %v925
      %1205 = vmatmul.mubr.f32.gmra.mrb[0].mxu0 %v924
      %v1206 = vpop.f32.mrb[0].mxu0
      %v1207 = vadd.f32 %v1097, %v1206
      %v1208 = vpop.f32.mrb[0].mxu0
      %v1209 = vadd.f32 %v1101, %v1208
      %1210 = vmatprep.mubr.f32.mxu0 %v929
      %1211 = vmatmul.mubr.f32.gmra.mrb[0].mxu0 %v928
      %v1212 = vpop.f32.mrb[0].mxu0
      %v1213 = vadd.f32 %v1097, %v1212
      %v1214 = vpop.f32.mrb[0].mxu0
      %v1215 = vadd.f32 %v1101, %v1214
      %1216 = vmatprep.mubr.f32.mxu0 %v933
      %1217 = vmatmul.mubr.f32.gmra.mrb[0].mxu0 %v932
      %v1218 = vpop.f32.mrb[0].mxu0
      %v1219 = vadd.f32 %v1097, %v1218
      %v1220 = vpop.f32.mrb[0].mxu0
      %v1221 = vadd.f32 %v1101, %v1220
      %1222 = vmatprep.mubr.f32.mxu0 %v937
      %1223 = vmatmul.mubr.f32.gmra.mrb[0].mxu0 %v936
      %v1224 = vpop.f32.mrb[0].mxu0
      %v1225 = vadd.f32 %v1097, %v1224
      %v1226 = vpop.f32.mrb[0].mxu0
      %v1227 = vadd.f32 %v1101, %v1226
      %1228 = vmatprep.mubr.f32.mxu0 %v941
      %1229 = vmatmul.mubr.f32.gmra.mrb[0].mxu0 %v940
      %v1230 = vpop.f32.mrb[0].mxu0
      %v1231 = vadd.f32 %v1097, %v1230
      %v1232 = vpop.f32.mrb[0].mxu0
      %v1233 = vadd.f32 %v1101, %v1232
      %1234 = vmatprep.mubr.f32.mxu0 %v945
      %1235 = vmatmul.mubr.f32.gmra.mrb[0].mxu0 %v944
      %v1236 = vpop.f32.mrb[0].mxu0
      %v1237 = vadd.f32 %v1097, %v1236
      %v1238 = vpop.f32.mrb[0].mxu0
      %v1239 = vadd.f32 %v1101, %v1238
      %1240 = vmatprep.mubr.f32.mxu0 %v949
      %1241 = vmatmul.mubr.f32.gmra.mrb[0].mxu0 %v948
      %v1242 = vpop.f32.mrb[0].mxu0
      %v1243 = vadd.f32 %v1097, %v1242
      %v1244 = vpop.f32.mrb[0].mxu0
      %v1245 = vadd.f32 %v1101, %v1244
      %1246 = vmatprep.mubr.f32.mxu0 %v953
      %1247 = vmatmul.mubr.f32.gmra.mrb[0].mxu0 %v952
      %v1248 = vpop.f32.mrb[0].mxu0
      %v1249 = vadd.f32 %v1097, %v1248
      %v1250 = vpop.f32.mrb[0].mxu0
      %v1251 = vadd.f32 %v1101, %v1250
      %1252 = vmatprep.mubr.f32.mxu0 %v957
      %1253 = vmatmul.mubr.f32.gmra.mrb[0].mxu0 %v956
      %v1254 = vpop.f32.mrb[0].mxu0
      %v1255 = vadd.f32 %v1097, %v1254
      %v1256 = vpop.f32.mrb[0].mxu0
      %v1257 = vadd.f32 %v1101, %v1256
      %1258 = vmatprep.mubr.f32.mxu0 %v961
      %1259 = vmatmul.mubr.f32.gmra.mrb[0].mxu0 %v960
      %v1260 = vpop.f32.mrb[0].mxu0
      %v1261 = vadd.f32 %v1097, %v1260
      %v1262 = vpop.f32.mrb[0].mxu0
      %v1263 = vadd.f32 %v1101, %v1262
      %1264 = vdwg.mxu0
      %1265 = vmatprep.subr.mxu0 %v1029
      %1266 = vmatpush1.msra.mxu0 %v1028
      %1267 = vmatprep.subr.mxu0 %v1031
      %1268 = vmatpush1.msra.mxu0 %v1030
      %1269 = vmatprep.subr.mxu0 %v1033
      %1270 = vmatpush1.msra.mxu0 %v1032
      %1271 = vmatprep.subr.mxu0 %v1035
      %1272 = vmatpush1.msra.mxu0 %v1034
      %1273 = vmatprep.subr.mxu0 %v1037
      %1274 = vmatpush1.msra.mxu0 %v1036
      %1275 = vmatprep.subr.mxu0 %v1039
      %1276 = vmatpush1.msra.mxu0 %v1038
      %1277 = vmatprep.subr.mxu0 %v1041
      %1278 = vmatpush1.msra.mxu0 %v1040
      %1279 = vmatprep.subr.mxu0 %v1043
      %1280 = vmatpush1.msra.mxu0 %v1042
      %1281 = vmatprep.subr.mxu0 %v1045
      %1282 = vmatpush1.msra.mxu0 %v1044
      %1283 = vmatprep.subr.mxu0 %v1047
      %1284 = vmatpush1.msra.mxu0 %v1046
      %1285 = vmatprep.subr.mxu0 %v1049
      %1286 = vmatpush1.msra.mxu0 %v1048
      %1287 = vmatprep.subr.mxu0 %v1051
      %1288 = vmatpush1.msra.mxu0 %v1050
      %1289 = vmatprep.subr.mxu0 %v1053
      %1290 = vmatpush1.msra.mxu0 %v1052
      %1291 = vmatprep.subr.mxu0 %v1055
      %1292 = vmatpush1.msra.mxu0 %v1054
      %1293 = vmatprep.subr.mxu0 %v1057
      %1294 = vmatpush1.msra.mxu0 %v1056
      %1295 = vmatprep.subr.mxu0 %v1059
      %1296 = vmatpush1.msra.mxu0 %v1058
      %1297 = vmatprep.subr.mxu0 %v1061
      %1298 = vmatpush1.msra.mxu0 %v1060
      %1299 = vmatprep.subr.mxu0 %v1063
      %1300 = vmatpush1.msra.mxu0 %v1062
      %1301 = vmatprep.subr.mxu0 %v1065
      %1302 = vmatpush1.msra.mxu0 %v1064
      %1303 = vmatprep.subr.mxu0 %v1067
      %1304 = vmatpush1.msra.mxu0 %v1066
      %1305 = vmatprep.subr.mxu0 %v1069
      %1306 = vmatpush1.msra.mxu0 %v1068
      %1307 = vmatprep.subr.mxu0 %v1071
      %1308 = vmatpush1.msra.mxu0 %v1070
      %1309 = vmatprep.subr.mxu0 %v1073
      %1310 = vmatpush1.msra.mxu0 %v1072
      %1311 = vmatprep.subr.mxu0 %v1075
      %1312 = vmatpush1.msra.mxu0 %v1074
      %1313 = vmatprep.subr.mxu0 %v1077
      %1314 = vmatpush1.msra.mxu0 %v1076
      %1315 = vmatprep.subr.mxu0 %v1079
      %1316 = vmatpush1.msra.mxu0 %v1078
      %1317 = vmatprep.subr.mxu0 %v1081
      %1318 = vmatpush1.msra.mxu0 %v1080
      %1319 = vmatprep.subr.mxu0 %v1083
      %1320 = vmatpush1.msra.mxu0 %v1082
      %1321 = vmatprep.subr.mxu0 %v1085
      %1322 = vmatpush1.msra.mxu0 %v1084
      %1323 = vmatprep.subr.mxu0 %v1087
      %1324 = vmatpush1.msra.mxu0 %v1086
      %1325 = vmatprep.subr.mxu0 %v1089
      %1326 = vmatpush1.msra.mxu0 %v1088
      %1327 = vmatprep.subr.mxu0 %v1091
      %1328 = vmatpush1.msra.mxu0 %v1090
      %1329 = vmatprep.mubr.f32.mxu0 %v903
      %1330 = vmatmul.mubr.f32.gmra.mrb[0].mxu0 %v902
      %v1331 = vpop.f32.mrb[0].mxu0
      %v1332 = vadd.f32 %v1171, %v1331
      %v1333 = vpop.f32.mrb[0].mxu0
      %v1334 = vadd.f32 %v1173, %v1333
      %1335 = vmatprep.mubr.f32.mxu0 %v907
      %1336 = vmatmul.mubr.f32.gmra.mrb[0].mxu0 %v906
      %v1337 = vpop.f32.mrb[0].mxu0
      %v1338 = vadd.f32 %v1177, %v1337
      %v1339 = vpop.f32.mrb[0].mxu0
      %v1340 = vadd.f32 %v1179, %v1339
      %1341 = vmatprep.mubr.f32.mxu0 %v911
      %1342 = vmatmul.mubr.f32.gmra.mrb[0].mxu0 %v910
      %v1343 = vpop.f32.mrb[0].mxu0
      %v1344 = vadd.f32 %v1183, %v1343
      %v1345 = vpop.f32.mrb[0].mxu0
      %v1346 = vadd.f32 %v1185, %v1345
      %1347 = vmatprep.mubr.f32.mxu0 %v915
      %1348 = vmatmul.mubr.f32.gmra.mrb[0].mxu0 %v914
      %v1349 = vpop.f32.mrb[0].mxu0
      %v1350 = vadd.f32 %v1189, %v1349
      %v1351 = vpop.f32.mrb[0].mxu0
      %v1352 = vadd.f32 %v1191, %v1351
      %1353 = vmatprep.mubr.f32.mxu0 %v919
      %1354 = vmatmul.mubr.f32.gmra.mrb[0].mxu0 %v918
      %v1355 = vpop.f32.mrb[0].mxu0
      %v1356 = vadd.f32 %v1195, %v1355
      %v1357 = vpop.f32.mrb[0].mxu0
      %v1358 = vadd.f32 %v1197, %v1357
      %1359 = vmatprep.mubr.f32.mxu0 %v923
      %1360 = vmatmul.mubr.f32.gmra.mrb[0].mxu0 %v922
      %v1361 = vpop.f32.mrb[0].mxu0
      %v1362 = vadd.f32 %v1201, %v1361
      %v1363 = vpop.f32.mrb[0].mxu0
      %v1364 = vadd.f32 %v1203, %v1363
      %1365 = vmatprep.mubr.f32.mxu0 %v927
      %1366 = vmatmul.mubr.f32.gmra.mrb[0].mxu0 %v926
      %v1367 = vpop.f32.mrb[0].mxu0
      %v1368 = vadd.f32 %v1207, %v1367
      %v1369 = vpop.f32.mrb[0].mxu0
      %v1370 = vadd.f32 %v1209, %v1369
      %1371 = vmatprep.mubr.f32.mxu0 %v931
      %1372 = vmatmul.mubr.f32.gmra.mrb[0].mxu0 %v930
      %v1373 = vpop.f32.mrb[0].mxu0
      %v1374 = vadd.f32 %v1213, %v1373
      %v1375 = vpop.f32.mrb[0].mxu0
      %v1376 = vadd.f32 %v1215, %v1375
      %1377 = vmatprep.mubr.f32.mxu0 %v935
      %1378 = vmatmul.mubr.f32.gmra.mrb[0].mxu0 %v934
      %v1379 = vpop.f32.mrb[0].mxu0
      %v1380 = vadd.f32 %v1219, %v1379
      %v1381 = vpop.f32.mrb[0].mxu0
      %v1382 = vadd.f32 %v1221, %v1381
      %1383 = vmatprep.mubr.f32.mxu0 %v939
      %1384 = vmatmul.mubr.f32.gmra.mrb[0].mxu0 %v938
      %v1385 = vpop.f32.mrb[0].mxu0
      %v1386 = vadd.f32 %v1225, %v1385
      %v1387 = vpop.f32.mrb[0].mxu0
      %v1388 = vadd.f32 %v1227, %v1387
      %1389 = vmatprep.mubr.f32.mxu0 %v943
      %1390 = vmatmul.mubr.f32.gmra.mrb[0].mxu0 %v942
      %v1391 = vpop.f32.mrb[0].mxu0
      %v1392 = vadd.f32 %v1231, %v1391
      %v1393 = vpop.f32.mrb[0].mxu0
      %v1394 = vadd.f32 %v1233, %v1393
      %1395 = vmatprep.mubr.f32.mxu0 %v947
      %1396 = vmatmul.mubr.f32.gmra.mrb[0].mxu0 %v946
      %v1397 = vpop.f32.mrb[0].mxu0
      %v1398 = vadd.f32 %v1237, %v1397
      %v1399 = vpop.f32.mrb[0].mxu0
      %v1400 = vadd.f32 %v1239, %v1399
      %1401 = vmatprep.mubr.f32.mxu0 %v951
      %1402 = vmatmul.mubr.f32.gmra.mrb[0].mxu0 %v950
      %v1403 = vpop.f32.mrb[0].mxu0
      %v1404 = vadd.f32 %v1243, %v1403
      %v1405 = vpop.f32.mrb[0].mxu0
      %v1406 = vadd.f32 %v1245, %v1405
      %1407 = vmatprep.mubr.f32.mxu0 %v955
      %1408 = vmatmul.mubr.f32.gmra.mrb[0].mxu0 %v954
      %v1409 = vpop.f32.mrb[0].mxu0
      %v1410 = vadd.f32 %v1249, %v1409
      %v1411 = vpop.f32.mrb[0].mxu0
      %v1412 = vadd.f32 %v1251, %v1411
      %1413 = vmatprep.mubr.f32.mxu0 %v959
      %1414 = vmatmul.mubr.f32.gmra.mrb[0].mxu0 %v958
      %v1415 = vpop.f32.mrb[0].mxu0
      %v1416 = vadd.f32 %v1255, %v1415
      %v1417 = vpop.f32.mrb[0].mxu0
      %v1418 = vadd.f32 %v1257, %v1417
      %1419 = vmatprep.mubr.f32.mxu0 %v963
      %1420 = vmatmul.mubr.f32.gmra.mrb[0].mxu0 %v962
      %v1421 = vpop.f32.mrb[0].mxu0
      %v1422 = vadd.f32 %v1261, %v1421
      %v1423 = vpop.f32.mrb[0].mxu0
      %v1424 = vadd.f32 %v1263, %v1423
      %1425 = vdwg.mxu0
      %v1426 = vmax.f32 %v1332, 0.0
      %v1427 = vmax.f32 %v1334, 0.0
      %v1428 = vmax.f32 %v1338, 0.0
      %v1429 = vmax.f32 %v1340, 0.0
      %v1430 = vmax.f32 %v1344, 0.0
      %v1431 = vmax.f32 %v1346, 0.0
      %v1432 = vmax.f32 %v1350, 0.0
      %v1433 = vmax.f32 %v1352, 0.0
      %v1434 = vmax.f32 %v1356, 0.0
      %v1435 = vmax.f32 %v1358, 0.0
      %v1436 = vmax.f32 %v1362, 0.0
      %v1437 = vmax.f32 %v1364, 0.0
      %v1438 = vmax.f32 %v1368, 0.0
      %v1439 = vmax.f32 %v1370, 0.0
      %v1440 = vmax.f32 %v1374, 0.0
      %v1441 = vmax.f32 %v1376, 0.0
      %v1442 = vmax.f32 %v1380, 0.0
      %v1443 = vmax.f32 %v1382, 0.0
      %v1444 = vmax.f32 %v1386, 0.0
      %v1445 = vmax.f32 %v1388, 0.0
      %v1446 = vmax.f32 %v1392, 0.0
      %v1447 = vmax.f32 %v1394, 0.0
      %v1448 = vmax.f32 %v1398, 0.0
      %v1449 = vmax.f32 %v1400, 0.0
      %v1450 = vmax.f32 %v1404, 0.0
      %v1451 = vmax.f32 %v1406, 0.0
      %v1452 = vmax.f32 %v1410, 0.0
      %v1453 = vmax.f32 %v1412, 0.0
      %v1454 = vmax.f32 %v1416, 0.0
      %v1455 = vmax.f32 %v1418, 0.0
      %v1456 = vmax.f32 %v1422, 0.0
      %v1457 = vmax.f32 %v1424, 0.0
      %v1458 = vld [vmem:[%s6] sm:$0xff]
      %v1459 = vld [vmem:[%s6 + $0x8] sm:$0xff]
      %v1460 = vld [vmem:[%s6 + $0x10] sm:$0xff]
      %v1461 = vld [vmem:[%s6 + $0x18] sm:$0xff]
      %v1462 = vld [vmem:[%s6 + $0x20] sm:$0xff]
      %v1463 = vld [vmem:[%s6 + $0x28] sm:$0xff]
      %v1464 = vld [vmem:[%s6 + $0x30] sm:$0xff]
      %v1465 = vld [vmem:[%s6 + $0x38] sm:$0xff]
      %v1466 = vld [vmem:[%s6 + $0x40] sm:$0xff]
      %v1467 = vld [vmem:[%s6 + $0x48] sm:$0xff]
      %v1468 = vld [vmem:[%s6 + $0x50] sm:$0xff]
      %v1469 = vld [vmem:[%s6 + $0x58] sm:$0xff]
      %v1470 = vld [vmem:[%s6 + $0x60] sm:$0xff]
      %v1471 = vld [vmem:[%s6 + $0x68] sm:$0xff]
      %v1472 = vld [vmem:[%s6 + $0x70] sm:$0xff]
      %v1473 = vld [vmem:[%s6 + $0x78] sm:$0xff]
      %v1474 = vld [vmem:[%s6 + $0x80] sm:$0xff]
      %v1475 = vld [vmem:[%s6 + $0x88] sm:$0xff]
      %v1476 = vld [vmem:[%s6 + $0x90] sm:$0xff]
      %v1477 = vld [vmem:[%s6 + $0x98] sm:$0xff]
      %v1478 = vld [vmem:[%s6 + $0xa0] sm:$0xff]
      %v1479 = vld [vmem:[%s6 + $0xa8] sm:$0xff]
      %v1480 = vld [vmem:[%s6 + $0xb0] sm:$0xff]
      %v1481 = vld [vmem:[%s6 + $0xb8] sm:$0xff]
      %v1482 = vld [vmem:[%s6 + $0xc0] sm:$0xff]
      %v1483 = vld [vmem:[%s6 + $0xc8] sm:$0xff]
      %v1484 = vld [vmem:[%s6 + $0xd0] sm:$0xff]
      %v1485 = vld [vmem:[%s6 + $0xd8] sm:$0xff]
      %v1486 = vld [vmem:[%s6 + $0xe0] sm:$0xff]
      %v1487 = vld [vmem:[%s6 + $0xe8] sm:$0xff]
      %v1488 = vld [vmem:[%s6 + $0xf0] sm:$0xff]
      %v1489 = vld [vmem:[%s6 + $0xf8] sm:$0xff]
      %v1490 = vld [vmem:[%s7] sm:$0x1]
      %v1492 = vlaneseq
      %v1493 = vshrl.u32 %v1492, 7
      %v1494 = vsub.s32 0, %v1493
      %v1495 = vrot.slane %v1490, %v1494
      %1497 = vmatprep.subr.mxu0 0.0
      %1498 = vmatpush1.msra.mxu0 %v1458
      %1499 = vmatprep.subr.mxu0 0.0
      %1500 = vmatpush1.msra.mxu0 %v1459
      %1501 = vmatprep.subr.mxu0 0.0
      %1502 = vmatpush1.msra.mxu0 %v1460
      %1503 = vmatprep.subr.mxu0 0.0
      %1504 = vmatpush1.msra.mxu0 %v1461
      %1505 = vmatprep.subr.mxu0 0.0
      %1506 = vmatpush1.msra.mxu0 %v1462
      %1507 = vmatprep.subr.mxu0 0.0
      %1508 = vmatpush1.msra.mxu0 %v1463
      %1509 = vmatprep.subr.mxu0 0.0
      %1510 = vmatpush1.msra.mxu0 %v1464
      %1511 = vmatprep.subr.mxu0 0.0
      %1512 = vmatpush1.msra.mxu0 %v1465
      %1513 = vmatprep.subr.mxu0 0.0
      %1514 = vmatpush1.msra.mxu0 %v1466
      %1515 = vmatprep.subr.mxu0 0.0
      %1516 = vmatpush1.msra.mxu0 %v1467
      %1517 = vmatprep.subr.mxu0 0.0
      %1518 = vmatpush1.msra.mxu0 %v1468
      %1519 = vmatprep.subr.mxu0 0.0
      %1520 = vmatpush1.msra.mxu0 %v1469
      %1521 = vmatprep.subr.mxu0 0.0
      %1522 = vmatpush1.msra.mxu0 %v1470
      %1523 = vmatprep.subr.mxu0 0.0
      %1524 = vmatpush1.msra.mxu0 %v1471
      %1525 = vmatprep.subr.mxu0 0.0
      %1526 = vmatpush1.msra.mxu0 %v1472
      %1527 = vmatprep.subr.mxu0 0.0
      %1528 = vmatpush1.msra.mxu0 %v1473
      %1529 = vmatprep.subr.mxu0 0.0
      %1530 = vmatpush1.msra.mxu0 %v1474
      %1531 = vmatprep.subr.mxu0 0.0
      %1532 = vmatpush1.msra.mxu0 %v1475
      %1533 = vmatprep.subr.mxu0 0.0
      %1534 = vmatpush1.msra.mxu0 %v1476
      %1535 = vmatprep.subr.mxu0 0.0
      %1536 = vmatpush1.msra.mxu0 %v1477
      %1537 = vmatprep.subr.mxu0 0.0
      %1538 = vmatpush1.msra.mxu0 %v1478
      %1539 = vmatprep.subr.mxu0 0.0
      %1540 = vmatpush1.msra.mxu0 %v1479
      %1541 = vmatprep.subr.mxu0 0.0
      %1542 = vmatpush1.msra.mxu0 %v1480
      %1543 = vmatprep.subr.mxu0 0.0
      %1544 = vmatpush1.msra.mxu0 %v1481
      %1545 = vmatprep.subr.mxu0 0.0
      %1546 = vmatpush1.msra.mxu0 %v1482
      %1547 = vmatprep.subr.mxu0 0.0
      %1548 = vmatpush1.msra.mxu0 %v1483
      %1549 = vmatprep.subr.mxu0 0.0
      %1550 = vmatpush1.msra.mxu0 %v1484
      %1551 = vmatprep.subr.mxu0 0.0
      %1552 = vmatpush1.msra.mxu0 %v1485
      %1553 = vmatprep.subr.mxu0 0.0
      %1554 = vmatpush1.msra.mxu0 %v1486
      %1555 = vmatprep.subr.mxu0 0.0
      %1556 = vmatpush1.msra.mxu0 %v1487
      %1557 = vmatprep.subr.mxu0 0.0
      %1558 = vmatpush1.msra.mxu0 %v1488
      %1559 = vmatprep.subr.mxu0 0.0
      %1560 = vmatpush1.msra.mxu0 %v1489
      %1561 = vmatprep.mubr.f32.mxu0 %v1427
      %1562 = vmatmul.mubr.f32.gmra.mrb[0].mxu0 %v1426
      %v1563 = vpop.f32.mrb[0].mxu0
      %v1564 = vadd.f32 %v1495, %v1563
      %v1565 = vpop.f32.mrb[0].mxu0
      %1566 = vmatprep.mubr.f32.mxu0 %v1429
      %1567 = vmatmul.mubr.f32.gmra.mrb[0].mxu0 %v1428
      %v1568 = vpop.f32.mrb[0].mxu0
      %v1569 = vadd.f32 %v1495, %v1568
      %v1570 = vpop.f32.mrb[0].mxu0
      %1571 = vmatprep.mubr.f32.mxu0 %v1431
      %1572 = vmatmul.mubr.f32.gmra.mrb[0].mxu0 %v1430
      %v1573 = vpop.f32.mrb[0].mxu0
      %v1574 = vadd.f32 %v1495, %v1573
      %v1575 = vpop.f32.mrb[0].mxu0
      %1576 = vmatprep.mubr.f32.mxu0 %v1433
      %1577 = vmatmul.mubr.f32.gmra.mrb[0].mxu0 %v1432
      %v1578 = vpop.f32.mrb[0].mxu0
      %v1579 = vadd.f32 %v1495, %v1578
      %v1580 = vpop.f32.mrb[0].mxu0
      %1581 = vmatprep.mubr.f32.mxu0 %v1435
      %1582 = vmatmul.mubr.f32.gmra.mrb[0].mxu0 %v1434
      %v1583 = vpop.f32.mrb[0].mxu0
      %v1584 = vadd.f32 %v1495, %v1583
      %v1585 = vpop.f32.mrb[0].mxu0
      %1586 = vmatprep.mubr.f32.mxu0 %v1437
      %1587 = vmatmul.mubr.f32.gmra.mrb[0].mxu0 %v1436
      %v1588 = vpop.f32.mrb[0].mxu0
      %v1589 = vadd.f32 %v1495, %v1588
      %v1590 = vpop.f32.mrb[0].mxu0
      %1591 = vmatprep.mubr.f32.mxu0 %v1439
      %1592 = vmatmul.mubr.f32.gmra.mrb[0].mxu0 %v1438
      %v1593 = vpop.f32.mrb[0].mxu0
      %v1594 = vadd.f32 %v1495, %v1593
      %v1595 = vpop.f32.mrb[0].mxu0
      %1596 = vmatprep.mubr.f32.mxu0 %v1441
      %1597 = vmatmul.mubr.f32.gmra.mrb[0].mxu0 %v1440
      %v1598 = vpop.f32.mrb[0].mxu0
      %v1599 = vadd.f32 %v1495, %v1598
      %v1600 = vpop.f32.mrb[0].mxu0
      %1601 = vmatprep.mubr.f32.mxu0 %v1443
      %1602 = vmatmul.mubr.f32.gmra.mrb[0].mxu0 %v1442
      %v1603 = vpop.f32.mrb[0].mxu0
      %v1604 = vadd.f32 %v1495, %v1603
      %v1605 = vpop.f32.mrb[0].mxu0
      %1606 = vmatprep.mubr.f32.mxu0 %v1445
      %1607 = vmatmul.mubr.f32.gmra.mrb[0].mxu0 %v1444
      %v1608 = vpop.f32.mrb[0].mxu0
      %v1609 = vadd.f32 %v1495, %v1608
      %v1610 = vpop.f32.mrb[0].mxu0
      %1611 = vmatprep.mubr.f32.mxu0 %v1447
      %1612 = vmatmul.mubr.f32.gmra.mrb[0].mxu0 %v1446
      %v1613 = vpop.f32.mrb[0].mxu0
      %v1614 = vadd.f32 %v1495, %v1613
      %v1615 = vpop.f32.mrb[0].mxu0
      %1616 = vmatprep.mubr.f32.mxu0 %v1449
      %1617 = vmatmul.mubr.f32.gmra.mrb[0].mxu0 %v1448
      %v1618 = vpop.f32.mrb[0].mxu0
      %v1619 = vadd.f32 %v1495, %v1618
      %v1620 = vpop.f32.mrb[0].mxu0
      %1621 = vmatprep.mubr.f32.mxu0 %v1451
      %1622 = vmatmul.mubr.f32.gmra.mrb[0].mxu0 %v1450
      %v1623 = vpop.f32.mrb[0].mxu0
      %v1624 = vadd.f32 %v1495, %v1623
      %v1625 = vpop.f32.mrb[0].mxu0
      %1626 = vmatprep.mubr.f32.mxu0 %v1453
      %1627 = vmatmul.mubr.f32.gmra.mrb[0].mxu0 %v1452
      %v1628 = vpop.f32.mrb[0].mxu0
      %v1629 = vadd.f32 %v1495, %v1628
      %v1630 = vpop.f32.mrb[0].mxu0
      %1631 = vmatprep.mubr.f32.mxu0 %v1455
      %1632 = vmatmul.mubr.f32.gmra.mrb[0].mxu0 %v1454
      %v1633 = vpop.f32.mrb[0].mxu0
      %v1634 = vadd.f32 %v1495, %v1633
      %v1635 = vpop.f32.mrb[0].mxu0
      %1636 = vmatprep.mubr.f32.mxu0 %v1457
      %1637 = vmatmul.mubr.f32.gmra.mrb[0].mxu0 %v1456
      %v1638 = vpop.f32.mrb[0].mxu0
      %v1639 = vadd.f32 %v1495, %v1638
      %v1640 = vpop.f32.mrb[0].mxu0
      %1641 = vdwg.mxu0
      %v1642 = vmax.f32 %v1564, 0.0
      %v1643 = vmax.f32 %v1569, 0.0
      %v1644 = vmax.f32 %v1574, 0.0
      %v1645 = vmax.f32 %v1579, 0.0
      %v1646 = vmax.f32 %v1584, 0.0
      %v1647 = vmax.f32 %v1589, 0.0
      %v1648 = vmax.f32 %v1594, 0.0
      %v1649 = vmax.f32 %v1599, 0.0
      %v1650 = vmax.f32 %v1604, 0.0
      %v1651 = vmax.f32 %v1609, 0.0
      %v1652 = vmax.f32 %v1614, 0.0
      %v1653 = vmax.f32 %v1619, 0.0
      %v1654 = vmax.f32 %v1624, 0.0
      %v1655 = vmax.f32 %v1629, 0.0
      %v1656 = vmax.f32 %v1634, 0.0
      %v1657 = vmax.f32 %v1639, 0.0
      %v1658 = vld [vmem:[%s8] sm:$0xff]
      %v1659 = vld [vmem:[%s8 + $0x8] sm:$0xff]
      %v1660 = vld [vmem:[%s8 + $0x10] sm:$0xff]
      %v1661 = vld [vmem:[%s8 + $0x18] sm:$0xff]
      %v1662 = vld [vmem:[%s8 + $0x20] sm:$0xff]
      %v1663 = vld [vmem:[%s8 + $0x28] sm:$0xff]
      %v1664 = vld [vmem:[%s8 + $0x30] sm:$0xff]
      %v1665 = vld [vmem:[%s8 + $0x38] sm:$0xff]
      %v1666 = vld [vmem:[%s8 + $0x40] sm:$0xff]
      %v1667 = vld [vmem:[%s8 + $0x48] sm:$0xff]
      %v1668 = vld [vmem:[%s8 + $0x50] sm:$0xff]
      %v1669 = vld [vmem:[%s8 + $0x58] sm:$0xff]
      %v1670 = vld [vmem:[%s8 + $0x60] sm:$0xff]
      %v1671 = vld [vmem:[%s8 + $0x68] sm:$0xff]
      %v1672 = vld [vmem:[%s8 + $0x70] sm:$0xff]
      %v1673 = vld [vmem:[%s8 + $0x78] sm:$0xff]
      %v1674 = vld [vmem:[%s9] sm:$0x1]
      %v1676 = vlaneseq
      %v1677 = vshrl.u32 %v1676, 7
      %v1678 = vsub.s32 0, %v1677
      %v1679 = vrot.slane %v1674, %v1678
      %1681 = vmatprep.subr.mxu0 0.0
      %1682 = vmatpush1.msra.mxu0 %v1658
      %1683 = vmatprep.subr.mxu0 0.0
      %1684 = vmatpush1.msra.mxu0 %v1659
      %1685 = vmatprep.subr.mxu0 0.0
      %1686 = vmatpush1.msra.mxu0 %v1660
      %1687 = vmatprep.subr.mxu0 0.0
      %1688 = vmatpush1.msra.mxu0 %v1661
      %1689 = vmatprep.subr.mxu0 0.0
      %1690 = vmatpush1.msra.mxu0 %v1662
      %1691 = vmatprep.subr.mxu0 0.0
      %1692 = vmatpush1.msra.mxu0 %v1663
      %1693 = vmatprep.subr.mxu0 0.0
      %1694 = vmatpush1.msra.mxu0 %v1664
      %1695 = vmatprep.subr.mxu0 0.0
      %1696 = vmatpush1.msra.mxu0 %v1665
      %1697 = vmatprep.subr.mxu0 0.0
      %1698 = vmatpush1.msra.mxu0 %v1666
      %1699 = vmatprep.subr.mxu0 0.0
      %1700 = vmatpush1.msra.mxu0 %v1667
      %1701 = vmatprep.subr.mxu0 0.0
      %1702 = vmatpush1.msra.mxu0 %v1668
      %1703 = vmatprep.subr.mxu0 0.0
      %1704 = vmatpush1.msra.mxu0 %v1669
      %1705 = vmatprep.subr.mxu0 0.0
      %1706 = vmatpush1.msra.mxu0 %v1670
      %1707 = vmatprep.subr.mxu0 0.0
      %1708 = vmatpush1.msra.mxu0 %v1671
      %1709 = vmatprep.subr.mxu0 0.0
      %1710 = vmatpush1.msra.mxu0 %v1672
      %1711 = vmatprep.subr.mxu0 0.0
      %1712 = vmatpush1.msra.mxu0 %v1673
      %1713 = vmatprep.subr.mxu0 0.0
      %1714 = vmatpush1.msra.mxu0 0.0
      %1715 = vmatprep.subr.mxu0 0.0
      %1716 = vmatpush1.msra.mxu0 0.0
      %1717 = vmatprep.subr.mxu0 0.0
      %1718 = vmatpush1.msra.mxu0 0.0
      %1719 = vmatprep.subr.mxu0 0.0
      %1720 = vmatpush1.msra.mxu0 0.0
      %1721 = vmatprep.subr.mxu0 0.0
      %1722 = vmatpush1.msra.mxu0 0.0
      %1723 = vmatprep.subr.mxu0 0.0
      %1724 = vmatpush1.msra.mxu0 0.0
      %1725 = vmatprep.subr.mxu0 0.0
      %1726 = vmatpush1.msra.mxu0 0.0
      %1727 = vmatprep.subr.mxu0 0.0
      %1728 = vmatpush1.msra.mxu0 0.0
      %1729 = vmatprep.subr.mxu0 0.0
      %1730 = vmatpush1.msra.mxu0 0.0
      %1731 = vmatprep.subr.mxu0 0.0
      %1732 = vmatpush1.msra.mxu0 0.0
      %1733 = vmatprep.subr.mxu0 0.0
      %1734 = vmatpush1.msra.mxu0 0.0
      %1735 = vmatprep.subr.mxu0 0.0
      %1736 = vmatpush1.msra.mxu0 0.0
      %1737 = vmatprep.subr.mxu0 0.0
      %1738 = vmatpush1.msra.mxu0 0.0
      %1739 = vmatprep.subr.mxu0 0.0
      %1740 = vmatpush1.msra.mxu0 0.0
      %1741 = vmatprep.subr.mxu0 0.0
      %1742 = vmatpush1.msra.mxu0 0.0
      %1743 = vmatprep.subr.mxu0 0.0
      %1744 = vmatpush1.msra.mxu0 0.0
      %1745 = vmatprep.mubr.f32.mxu0 0.0
      %1746 = vmatmul.mubr.f32.gmra.mrb[0].mxu0 %v1642
      %v1747 = vpop.f32.mrb[0].mxu0
      %v1748 = vadd.f32 %v1679, %v1747
      %v1749 = vpop.f32.mrb[0].mxu0
      %1750 = vmatprep.mubr.f32.mxu0 0.0
      %1751 = vmatmul.mubr.f32.gmra.mrb[0].mxu0 %v1643
      %v1752 = vpop.f32.mrb[0].mxu0
      %v1753 = vadd.f32 %v1679, %v1752
      %v1754 = vpop.f32.mrb[0].mxu0
      %1755 = vmatprep.mubr.f32.mxu0 0.0
      %1756 = vmatmul.mubr.f32.gmra.mrb[0].mxu0 %v1644
      %v1757 = vpop.f32.mrb[0].mxu0
      %v1758 = vadd.f32 %v1679, %v1757
      %v1759 = vpop.f32.mrb[0].mxu0
      %1760 = vmatprep.mubr.f32.mxu0 0.0
      %1761 = vmatmul.mubr.f32.gmra.mrb[0].mxu0 %v1645
      %v1762 = vpop.f32.mrb[0].mxu0
      %v1763 = vadd.f32 %v1679, %v1762
      %v1764 = vpop.f32.mrb[0].mxu0
      %1765 = vmatprep.mubr.f32.mxu0 0.0
      %1766 = vmatmul.mubr.f32.gmra.mrb[0].mxu0 %v1646
      %v1767 = vpop.f32.mrb[0].mxu0
      %v1768 = vadd.f32 %v1679, %v1767
      %v1769 = vpop.f32.mrb[0].mxu0
      %1770 = vmatprep.mubr.f32.mxu0 0.0
      %1771 = vmatmul.mubr.f32.gmra.mrb[0].mxu0 %v1647
      %v1772 = vpop.f32.mrb[0].mxu0
      %v1773 = vadd.f32 %v1679, %v1772
      %v1774 = vpop.f32.mrb[0].mxu0
      %1775 = vmatprep.mubr.f32.mxu0 0.0
      %1776 = vmatmul.mubr.f32.gmra.mrb[0].mxu0 %v1648
      %v1777 = vpop.f32.mrb[0].mxu0
      %v1778 = vadd.f32 %v1679, %v1777
      %v1779 = vpop.f32.mrb[0].mxu0
      %1780 = vmatprep.mubr.f32.mxu0 0.0
      %1781 = vmatmul.mubr.f32.gmra.mrb[0].mxu0 %v1649
      %v1782 = vpop.f32.mrb[0].mxu0
      %v1783 = vadd.f32 %v1679, %v1782
      %v1784 = vpop.f32.mrb[0].mxu0
      %1785 = vmatprep.mubr.f32.mxu0 0.0
      %1786 = vmatmul.mubr.f32.gmra.mrb[0].mxu0 %v1650
      %v1787 = vpop.f32.mrb[0].mxu0
      %v1788 = vadd.f32 %v1679, %v1787
      %v1789 = vpop.f32.mrb[0].mxu0
      %1790 = vmatprep.mubr.f32.mxu0 0.0
      %1791 = vmatmul.mubr.f32.gmra.mrb[0].mxu0 %v1651
      %v1792 = vpop.f32.mrb[0].mxu0
      %v1793 = vadd.f32 %v1679, %v1792
      %v1794 = vpop.f32.mrb[0].mxu0
      %1795 = vmatprep.mubr.f32.mxu0 0.0
      %1796 = vmatmul.mubr.f32.gmra.mrb[0].mxu0 %v1652
      %v1797 = vpop.f32.mrb[0].mxu0
      %v1798 = vadd.f32 %v1679, %v1797
      %v1799 = vpop.f32.mrb[0].mxu0
      %1800 = vmatprep.mubr.f32.mxu0 0.0
      %1801 = vmatmul.mubr.f32.gmra.mrb[0].mxu0 %v1653
      %v1802 = vpop.f32.mrb[0].mxu0
      %v1803 = vadd.f32 %v1679, %v1802
      %v1804 = vpop.f32.mrb[0].mxu0
      %1805 = vmatprep.mubr.f32.mxu0 0.0
      %1806 = vmatmul.mubr.f32.gmra.mrb[0].mxu0 %v1654
      %v1807 = vpop.f32.mrb[0].mxu0
      %v1808 = vadd.f32 %v1679, %v1807
      %v1809 = vpop.f32.mrb[0].mxu0
      %1810 = vmatprep.mubr.f32.mxu0 0.0
      %1811 = vmatmul.mubr.f32.gmra.mrb[0].mxu0 %v1655
      %v1812 = vpop.f32.mrb[0].mxu0
      %v1813 = vadd.f32 %v1679, %v1812
      %v1814 = vpop.f32.mrb[0].mxu0
      %1815 = vmatprep.mubr.f32.mxu0 0.0
      %1816 = vmatmul.mubr.f32.gmra.mrb[0].mxu0 %v1656
      %v1817 = vpop.f32.mrb[0].mxu0
      %v1818 = vadd.f32 %v1679, %v1817
      %v1819 = vpop.f32.mrb[0].mxu0
      %1820 = vmatprep.mubr.f32.mxu0 0.0
      %1821 = vmatmul.mubr.f32.gmra.mrb[0].mxu0 %v1657
      %v1822 = vpop.f32.mrb[0].mxu0
      %v1823 = vadd.f32 %v1679, %v1822
      %v1824 = vpop.f32.mrb[0].mxu0
      %1825 = vdwg.mxu0
      %v1826 = vld [vmem:[%s10] sm:$0xff]
      %v1827 = vld [vmem:[%s10 + $0x8] sm:$0xff]
      %v1828 = vld [vmem:[%s10 + $0x10] sm:$0xff]
      %v1829 = vld [vmem:[%s10 + $0x18] sm:$0xff]
      %v1830 = vld [vmem:[%s10 + $0x20] sm:$0xff]
      %v1831 = vld [vmem:[%s10 + $0x28] sm:$0xff]
      %v1832 = vld [vmem:[%s10 + $0x30] sm:$0xff]
      %v1833 = vld [vmem:[%s10 + $0x38] sm:$0xff]
      %v1834 = vld [vmem:[%s1] sm:$0xff]
      %v1835 = vld [vmem:[%s1 + $0x8] sm:$0xff]
      %v1836 = vld [vmem:[%s1 + $0x10] sm:$0xff]
      %v1837 = vld [vmem:[%s1 + $0x18] sm:$0xff]
      %v1838 = vld [vmem:[%s1 + $0x20] sm:$0xff]
      %v1839 = vld [vmem:[%s1 + $0x28] sm:$0xff]
      %v1840 = vld [vmem:[%s1 + $0x30] sm:$0xff]
      %v1841 = vld [vmem:[%s1 + $0x38] sm:$0xff]
      %v1842 = vld [vmem:[%s1 + $0x40] sm:$0xff]
      %v1843 = vld [vmem:[%s1 + $0x48] sm:$0xff]
      %v1844 = vld [vmem:[%s1 + $0x50] sm:$0xff]
      %v1845 = vld [vmem:[%s1 + $0x58] sm:$0xff]
      %v1846 = vld [vmem:[%s1 + $0x60] sm:$0xff]
      %v1847 = vld [vmem:[%s1 + $0x68] sm:$0xff]
      %v1848 = vld [vmem:[%s1 + $0x70] sm:$0xff]
      %v1849 = vld [vmem:[%s1 + $0x78] sm:$0xff]
      %vm1850 = vcmask 523264
      %v1852 = vsel %vm1850, %v1748, 0
      %v1855 = vsel %vm1850, %v1753, 0
      %v1858 = vsel %vm1850, %v1758, 0
      %v1861 = vsel %vm1850, %v1763, 0
      %v1864 = vsel %vm1850, %v1768, 0
      %v1867 = vsel %vm1850, %v1773, 0
      %v1870 = vsel %vm1850, %v1778, 0
      %v1873 = vsel %vm1850, %v1783, 0
      %v1876 = vsel %vm1850, %v1788, 0
      %v1879 = vsel %vm1850, %v1793, 0
      %v1882 = vsel %vm1850, %v1798, 0
      %v1885 = vsel %vm1850, %v1803, 0
      %v1888 = vsel %vm1850, %v1808, 0
      %v1891 = vsel %vm1850, %v1813, 0
      %v1894 = vsel %vm1850, %v1818, 0
      %v1897 = vsel %vm1850, %v1823, 0
      %1899 = vmatprep.subr.mxu0 0.0
      %1900 = vmatpush1.msra.mxu0 %v1826
      %1901 = vmatprep.subr.mxu0 0.0
      %1902 = vmatpush1.msra.mxu0 %v1827
      %1903 = vmatprep.subr.mxu0 0.0
      %1904 = vmatpush1.msra.mxu0 %v1828
      %1905 = vmatprep.subr.mxu0 0.0
      %1906 = vmatpush1.msra.mxu0 %v1829
      %1907 = vmatprep.subr.mxu0 0.0
      %1908 = vmatpush1.msra.mxu0 %v1830
      %1909 = vmatprep.subr.mxu0 0.0
      %1910 = vmatpush1.msra.mxu0 %v1831
      %1911 = vmatprep.subr.mxu0 0.0
      %1912 = vmatpush1.msra.mxu0 %v1832
      %1913 = vmatprep.subr.mxu0 0.0
      %1914 = vmatpush1.msra.mxu0 %v1833
      %1915 = vmatprep.subr.mxu0 0.0
      %1916 = vmatpush1.msra.mxu0 0.0
      %1917 = vmatprep.subr.mxu0 0.0
      %1918 = vmatpush1.msra.mxu0 0.0
      %1919 = vmatprep.subr.mxu0 0.0
      %1920 = vmatpush1.msra.mxu0 0.0
      %1921 = vmatprep.subr.mxu0 0.0
      %1922 = vmatpush1.msra.mxu0 0.0
      %1923 = vmatprep.subr.mxu0 0.0
      %1924 = vmatpush1.msra.mxu0 0.0
      %1925 = vmatprep.subr.mxu0 0.0
      %1926 = vmatpush1.msra.mxu0 0.0
      %1927 = vmatprep.subr.mxu0 0.0
      %1928 = vmatpush1.msra.mxu0 0.0
      %1929 = vmatprep.subr.mxu0 0.0
      %1930 = vmatpush1.msra.mxu0 0.0
      %1931 = vmatprep.subr.mxu0 0.0
      %1932 = vmatpush1.msra.mxu0 0.0
      %1933 = vmatprep.subr.mxu0 0.0
      %1934 = vmatpush1.msra.mxu0 0.0
      %1935 = vmatprep.subr.mxu0 0.0
      %1936 = vmatpush1.msra.mxu0 0.0
      %1937 = vmatprep.subr.mxu0 0.0
      %1938 = vmatpush1.msra.mxu0 0.0
      %1939 = vmatprep.subr.mxu0 0.0
      %1940 = vmatpush1.msra.mxu0 0.0
      %1941 = vmatprep.subr.mxu0 0.0
      %1942 = vmatpush1.msra.mxu0 0.0
      %1943 = vmatprep.subr.mxu0 0.0
      %1944 = vmatpush1.msra.mxu0 0.0
      %1945 = vmatprep.subr.mxu0 0.0
      %1946 = vmatpush1.msra.mxu0 0.0
      %1947 = vmatprep.subr.mxu0 0.0
      %1948 = vmatpush1.msra.mxu0 0.0
      %1949 = vmatprep.subr.mxu0 0.0
      %1950 = vmatpush1.msra.mxu0 0.0
      %1951 = vmatprep.subr.mxu0 0.0
      %1952 = vmatpush1.msra.mxu0 0.0
      %1953 = vmatprep.subr.mxu0 0.0
      %1954 = vmatpush1.msra.mxu0 0.0
      %1955 = vmatprep.subr.mxu0 0.0
      %1956 = vmatpush1.msra.mxu0 0.0
      %1957 = vmatprep.subr.mxu0 0.0
      %1958 = vmatpush1.msra.mxu0 0.0
      %1959 = vmatprep.subr.mxu0 0.0
      %1960 = vmatpush1.msra.mxu0 0.0
      %1961 = vmatprep.subr.mxu0 0.0
      %1962 = vmatpush1.msra.mxu0 0.0
      %1963 = vmatprep.mubr.f32.mxu0 0.0
      %1964 = vmatmul.mubr.f32.gmra.mrb[0].mxu0 %v1852
      %v1965 = vpop.f32.mrb[0].mxu0
      %v1966 = vadd.f32 %v1834, %v1965
      %v1967 = vpop.f32.mrb[0].mxu0
      %1968 = vmatprep.mubr.f32.mxu0 0.0
      %1969 = vmatmul.mubr.f32.gmra.mrb[0].mxu0 %v1855
      %v1970 = vpop.f32.mrb[0].mxu0
      %v1971 = vadd.f32 %v1835, %v1970
      %v1972 = vpop.f32.mrb[0].mxu0
      %1973 = vmatprep.mubr.f32.mxu0 0.0
      %1974 = vmatmul.mubr.f32.gmra.mrb[0].mxu0 %v1858
      %v1975 = vpop.f32.mrb[0].mxu0
      %v1976 = vadd.f32 %v1836, %v1975
      %v1977 = vpop.f32.mrb[0].mxu0
      %1978 = vmatprep.mubr.f32.mxu0 0.0
      %1979 = vmatmul.mubr.f32.gmra.mrb[0].mxu0 %v1861
      %v1980 = vpop.f32.mrb[0].mxu0
      %v1981 = vadd.f32 %v1837, %v1980
      %v1982 = vpop.f32.mrb[0].mxu0
      %1983 = vmatprep.mubr.f32.mxu0 0.0
      %1984 = vmatmul.mubr.f32.gmra.mrb[0].mxu0 %v1864
      %v1985 = vpop.f32.mrb[0].mxu0
      %v1986 = vadd.f32 %v1838, %v1985
      %v1987 = vpop.f32.mrb[0].mxu0
      %1988 = vmatprep.mubr.f32.mxu0 0.0
      %1989 = vmatmul.mubr.f32.gmra.mrb[0].mxu0 %v1867
      %v1990 = vpop.f32.mrb[0].mxu0
      %v1991 = vadd.f32 %v1839, %v1990
      %v1992 = vpop.f32.mrb[0].mxu0
      %1993 = vmatprep.mubr.f32.mxu0 0.0
      %1994 = vmatmul.mubr.f32.gmra.mrb[0].mxu0 %v1870
      %v1995 = vpop.f32.mrb[0].mxu0
      %v1996 = vadd.f32 %v1840, %v1995
      %v1997 = vpop.f32.mrb[0].mxu0
      %1998 = vmatprep.mubr.f32.mxu0 0.0
      %1999 = vmatmul.mubr.f32.gmra.mrb[0].mxu0 %v1873
      %v2000 = vpop.f32.mrb[0].mxu0
      %v2001 = vadd.f32 %v1841, %v2000
      %v2002 = vpop.f32.mrb[0].mxu0
      %2003 = vmatprep.mubr.f32.mxu0 0.0
      %2004 = vmatmul.mubr.f32.gmra.mrb[0].mxu0 %v1876
      %v2005 = vpop.f32.mrb[0].mxu0
      %v2006 = vadd.f32 %v1842, %v2005
      %v2007 = vpop.f32.mrb[0].mxu0
      %2008 = vmatprep.mubr.f32.mxu0 0.0
      %2009 = vmatmul.mubr.f32.gmra.mrb[0].mxu0 %v1879
      %v2010 = vpop.f32.mrb[0].mxu0
      %v2011 = vadd.f32 %v1843, %v2010
      %v2012 = vpop.f32.mrb[0].mxu0
      %2013 = vmatprep.mubr.f32.mxu0 0.0
      %2014 = vmatmul.mubr.f32.gmra.mrb[0].mxu0 %v1882
      %v2015 = vpop.f32.mrb[0].mxu0
      %v2016 = vadd.f32 %v1844, %v2015
      %v2017 = vpop.f32.mrb[0].mxu0
      %2018 = vmatprep.mubr.f32.mxu0 0.0
      %2019 = vmatmul.mubr.f32.gmra.mrb[0].mxu0 %v1885
      %v2020 = vpop.f32.mrb[0].mxu0
      %v2021 = vadd.f32 %v1845, %v2020
      %v2022 = vpop.f32.mrb[0].mxu0
      %2023 = vmatprep.mubr.f32.mxu0 0.0
      %2024 = vmatmul.mubr.f32.gmra.mrb[0].mxu0 %v1888
      %v2025 = vpop.f32.mrb[0].mxu0
      %v2026 = vadd.f32 %v1846, %v2025
      %v2027 = vpop.f32.mrb[0].mxu0
      %2028 = vmatprep.mubr.f32.mxu0 0.0
      %2029 = vmatmul.mubr.f32.gmra.mrb[0].mxu0 %v1891
      %v2030 = vpop.f32.mrb[0].mxu0
      %v2031 = vadd.f32 %v1847, %v2030
      %v2032 = vpop.f32.mrb[0].mxu0
      %2033 = vmatprep.mubr.f32.mxu0 0.0
      %2034 = vmatmul.mubr.f32.gmra.mrb[0].mxu0 %v1894
      %v2035 = vpop.f32.mrb[0].mxu0
      %v2036 = vadd.f32 %v1848, %v2035
      %v2037 = vpop.f32.mrb[0].mxu0
      %2038 = vmatprep.mubr.f32.mxu0 0.0
      %2039 = vmatmul.mubr.f32.gmra.mrb[0].mxu0 %v1897
      %v2040 = vpop.f32.mrb[0].mxu0
      %v2041 = vadd.f32 %v1849, %v2040
      %v2042 = vpop.f32.mrb[0].mxu0
      %2043 = vdwg.mxu0
      %v2044 = vmax.f32 %v1966, 0.0
      %v2045 = vmax.f32 %v1971, 0.0
      %v2046 = vmax.f32 %v1976, 0.0
      %v2047 = vmax.f32 %v1981, 0.0
      %v2048 = vmax.f32 %v1986, 0.0
      %v2049 = vmax.f32 %v1991, 0.0
      %v2050 = vmax.f32 %v1996, 0.0
      %v2051 = vmax.f32 %v2001, 0.0
      %v2052 = vmax.f32 %v2006, 0.0
      %v2053 = vmax.f32 %v2011, 0.0
      %v2054 = vmax.f32 %v2016, 0.0
      %v2055 = vmax.f32 %v2021, 0.0
      %v2056 = vmax.f32 %v2026, 0.0
      %v2057 = vmax.f32 %v2031, 0.0
      %v2058 = vmax.f32 %v2036, 0.0
      %v2059 = vmax.f32 %v2041, 0.0
      %v2060 = vld [vmem:[%s11] sm:$0xff]
      %v2061 = vld [vmem:[%s11 + $0x8] sm:$0xff]
      %v2062 = vld [vmem:[%s11 + $0x10] sm:$0xf]
      %v2063 = vld [vmem:[%s12] sm:$0x1]
      %v2065 = vlaneseq
      %v2066 = vshrl.u32 %v2065, 7
      %v2067 = vsub.s32 0, %v2066
      %v2068 = vrot.slane %v2063, %v2067
      %vm2070 = vcmask 162816
      %v2072 = vsel %vm2070, %v2044, 0
      %v2075 = vsel %vm2070, %v2045, 0
      %v2078 = vsel %vm2070, %v2046, 0
      %v2081 = vsel %vm2070, %v2047, 0
      %v2084 = vsel %vm2070, %v2048, 0
      %v2087 = vsel %vm2070, %v2049, 0
      %v2090 = vsel %vm2070, %v2050, 0
      %v2093 = vsel %vm2070, %v2051, 0
      %v2096 = vsel %vm2070, %v2052, 0
      %v2099 = vsel %vm2070, %v2053, 0
      %v2102 = vsel %vm2070, %v2054, 0
      %v2105 = vsel %vm2070, %v2055, 0
      %v2108 = vsel %vm2070, %v2056, 0
      %v2111 = vsel %vm2070, %v2057, 0
      %v2114 = vsel %vm2070, %v2058, 0
      %v2117 = vsel %vm2070, %v2059, 0
      %vm2119 = vcmask 1043456
      %v2121 = vsel %vm2119, %v2062, 0
      %2123 = vmatprep.subr.mxu0 0.0
      %2124 = vmatpush1.msra.mxu0 %v2060
      %2125 = vmatprep.subr.mxu0 0.0
      %2126 = vmatpush1.msra.mxu0 %v2061
      %2127 = vmatprep.subr.mxu0 0.0
      %2128 = vmatpush1.msra.mxu0 %v2121
      %2129 = vmatprep.subr.mxu0 0.0
      %2130 = vmatpush1.msra.mxu0 0.0
      %2131 = vmatprep.subr.mxu0 0.0
      %2132 = vmatpush1.msra.mxu0 0.0
      %2133 = vmatprep.subr.mxu0 0.0
      %2134 = vmatpush1.msra.mxu0 0.0
      %2135 = vmatprep.subr.mxu0 0.0
      %2136 = vmatpush1.msra.mxu0 0.0
      %2137 = vmatprep.subr.mxu0 0.0
      %2138 = vmatpush1.msra.mxu0 0.0
      %2139 = vmatprep.subr.mxu0 0.0
      %2140 = vmatpush1.msra.mxu0 0.0
      %2141 = vmatprep.subr.mxu0 0.0
      %2142 = vmatpush1.msra.mxu0 0.0
      %2143 = vmatprep.subr.mxu0 0.0
      %2144 = vmatpush1.msra.mxu0 0.0
      %2145 = vmatprep.subr.mxu0 0.0
      %2146 = vmatpush1.msra.mxu0 0.0
      %2147 = vmatprep.subr.mxu0 0.0
      %2148 = vmatpush1.msra.mxu0 0.0
      %2149 = vmatprep.subr.mxu0 0.0
      %2150 = vmatpush1.msra.mxu0 0.0
      %2151 = vmatprep.subr.mxu0 0.0
      %2152 = vmatpush1.msra.mxu0 0.0
      %2153 = vmatprep.subr.mxu0 0.0
      %2154 = vmatpush1.msra.mxu0 0.0
      %2155 = vmatprep.subr.mxu0 0.0
      %2156 = vmatpush1.msra.mxu0 0.0
      %2157 = vmatprep.subr.mxu0 0.0
      %2158 = vmatpush1.msra.mxu0 0.0
      %2159 = vmatprep.subr.mxu0 0.0
      %2160 = vmatpush1.msra.mxu0 0.0
      %2161 = vmatprep.subr.mxu0 0.0
      %2162 = vmatpush1.msra.mxu0 0.0
      %2163 = vmatprep.subr.mxu0 0.0
      %2164 = vmatpush1.msra.mxu0 0.0
      %2165 = vmatprep.subr.mxu0 0.0
      %2166 = vmatpush1.msra.mxu0 0.0
      %2167 = vmatprep.subr.mxu0 0.0
      %2168 = vmatpush1.msra.mxu0 0.0
      %2169 = vmatprep.subr.mxu0 0.0
      %2170 = vmatpush1.msra.mxu0 0.0
      %2171 = vmatprep.subr.mxu0 0.0
      %2172 = vmatpush1.msra.mxu0 0.0
      %2173 = vmatprep.subr.mxu0 0.0
      %2174 = vmatpush1.msra.mxu0 0.0
      %2175 = vmatprep.subr.mxu0 0.0
      %2176 = vmatpush1.msra.mxu0 0.0
      %2177 = vmatprep.subr.mxu0 0.0
      %2178 = vmatpush1.msra.mxu0 0.0
      %2179 = vmatprep.subr.mxu0 0.0
      %2180 = vmatpush1.msra.mxu0 0.0
      %2181 = vmatprep.subr.mxu0 0.0
      %2182 = vmatpush1.msra.mxu0 0.0
      %2183 = vmatprep.subr.mxu0 0.0
      %2184 = vmatpush1.msra.mxu0 0.0
      %2185 = vmatprep.subr.mxu0 0.0
      %2186 = vmatpush1.msra.mxu0 0.0
      %2187 = vmatprep.mubr.f32.mxu0 0.0
      %2188 = vmatmul.mubr.f32.gmra.mrb[0].mxu0 %v2072
      %v2189 = vpop.f32.mrb[0].mxu0
      %v2190 = vadd.f32 %v2068, %v2189
      %v2191 = vpop.f32.mrb[0].mxu0
      %2192 = vmatprep.mubr.f32.mxu0 0.0
      %2193 = vmatmul.mubr.f32.gmra.mrb[0].mxu0 %v2075
      %v2194 = vpop.f32.mrb[0].mxu0
      %v2195 = vadd.f32 %v2068, %v2194
      %v2196 = vpop.f32.mrb[0].mxu0
      %2197 = vmatprep.mubr.f32.mxu0 0.0
      %2198 = vmatmul.mubr.f32.gmra.mrb[0].mxu0 %v2078
      %v2199 = vpop.f32.mrb[0].mxu0
      %v2200 = vadd.f32 %v2068, %v2199
      %v2201 = vpop.f32.mrb[0].mxu0
      %2202 = vmatprep.mubr.f32.mxu0 0.0
      %2203 = vmatmul.mubr.f32.gmra.mrb[0].mxu0 %v2081
      %v2204 = vpop.f32.mrb[0].mxu0
      %v2205 = vadd.f32 %v2068, %v2204
      %v2206 = vpop.f32.mrb[0].mxu0
      %2207 = vmatprep.mubr.f32.mxu0 0.0
      %2208 = vmatmul.mubr.f32.gmra.mrb[0].mxu0 %v2084
      %v2209 = vpop.f32.mrb[0].mxu0
      %v2210 = vadd.f32 %v2068, %v2209
      %v2211 = vpop.f32.mrb[0].mxu0
      %2212 = vmatprep.mubr.f32.mxu0 0.0
      %2213 = vmatmul.mubr.f32.gmra.mrb[0].mxu0 %v2087
      %v2214 = vpop.f32.mrb[0].mxu0
      %v2215 = vadd.f32 %v2068, %v2214
      %v2216 = vpop.f32.mrb[0].mxu0
      %2217 = vmatprep.mubr.f32.mxu0 0.0
      %2218 = vmatmul.mubr.f32.gmra.mrb[0].mxu0 %v2090
      %v2219 = vpop.f32.mrb[0].mxu0
      %v2220 = vadd.f32 %v2068, %v2219
      %v2221 = vpop.f32.mrb[0].mxu0
      %2222 = vmatprep.mubr.f32.mxu0 0.0
      %2223 = vmatmul.mubr.f32.gmra.mrb[0].mxu0 %v2093
      %v2224 = vpop.f32.mrb[0].mxu0
      %v2225 = vadd.f32 %v2068, %v2224
      %v2226 = vpop.f32.mrb[0].mxu0
      %2227 = vmatprep.mubr.f32.mxu0 0.0
      %2228 = vmatmul.mubr.f32.gmra.mrb[0].mxu0 %v2096
      %v2229 = vpop.f32.mrb[0].mxu0
      %v2230 = vadd.f32 %v2068, %v2229
      %v2231 = vpop.f32.mrb[0].mxu0
      %2232 = vmatprep.mubr.f32.mxu0 0.0
      %2233 = vmatmul.mubr.f32.gmra.mrb[0].mxu0 %v2099
      %v2234 = vpop.f32.mrb[0].mxu0
      %v2235 = vadd.f32 %v2068, %v2234
      %v2236 = vpop.f32.mrb[0].mxu0
      %2237 = vmatprep.mubr.f32.mxu0 0.0
      %2238 = vmatmul.mubr.f32.gmra.mrb[0].mxu0 %v2102
      %v2239 = vpop.f32.mrb[0].mxu0
      %v2240 = vadd.f32 %v2068, %v2239
      %v2241 = vpop.f32.mrb[0].mxu0
      %2242 = vmatprep.mubr.f32.mxu0 0.0
      %2243 = vmatmul.mubr.f32.gmra.mrb[0].mxu0 %v2105
      %v2244 = vpop.f32.mrb[0].mxu0
      %v2245 = vadd.f32 %v2068, %v2244
      %v2246 = vpop.f32.mrb[0].mxu0
      %2247 = vmatprep.mubr.f32.mxu0 0.0
      %2248 = vmatmul.mubr.f32.gmra.mrb[0].mxu0 %v2108
      %v2249 = vpop.f32.mrb[0].mxu0
      %v2250 = vadd.f32 %v2068, %v2249
      %v2251 = vpop.f32.mrb[0].mxu0
      %2252 = vmatprep.mubr.f32.mxu0 0.0
      %2253 = vmatmul.mubr.f32.gmra.mrb[0].mxu0 %v2111
      %v2254 = vpop.f32.mrb[0].mxu0
      %v2255 = vadd.f32 %v2068, %v2254
      %v2256 = vpop.f32.mrb[0].mxu0
      %2257 = vmatprep.mubr.f32.mxu0 0.0
      %2258 = vmatmul.mubr.f32.gmra.mrb[0].mxu0 %v2114
      %v2259 = vpop.f32.mrb[0].mxu0
      %v2260 = vadd.f32 %v2068, %v2259
      %v2261 = vpop.f32.mrb[0].mxu0
      %2262 = vmatprep.mubr.f32.mxu0 0.0
      %2263 = vmatmul.mubr.f32.gmra.mrb[0].mxu0 %v2117
      %v2264 = vpop.f32.mrb[0].mxu0
      %v2265 = vadd.f32 %v2068, %v2264
      %v2266 = vpop.f32.mrb[0].mxu0
      %2267 = vdwg.mxu0
      %v2268 = vmax.f32 %v2190, 0.0
      %v2269 = vmax.f32 %v2195, 0.0
      %v2270 = vmax.f32 %v2200, 0.0
      %v2271 = vmax.f32 %v2205, 0.0
      %v2272 = vmax.f32 %v2210, 0.0
      %v2273 = vmax.f32 %v2215, 0.0
      %v2274 = vmax.f32 %v2220, 0.0
      %v2275 = vmax.f32 %v2225, 0.0
      %v2276 = vmax.f32 %v2230, 0.0
      %v2277 = vmax.f32 %v2235, 0.0
      %v2278 = vmax.f32 %v2240, 0.0
      %v2279 = vmax.f32 %v2245, 0.0
      %v2280 = vmax.f32 %v2250, 0.0
      %v2281 = vmax.f32 %v2255, 0.0
      %v2282 = vmax.f32 %v2260, 0.0
      %v2283 = vmax.f32 %v2265, 0.0
      %v2284 = vld [vmem:[%s13] sm:$0x1]
      %v2285 = vld [vmem:[#allocation3] sm:$0x1]
      %2287 = vset.pattern.permute.xlu0 0
      %2288 = vperm.xlu0 %2287, %v2285
      %v2289 = vpop.permute.xlu0 %2288
      %v2291 = vlaneseq
      %v2292 = vshrl.u32 %v2291, 7
      %v2293 = vsub.s32 0, %v2292
      %v2294 = vrot.slane %v2289, %v2293
      %vm2295 = vcmask 80896
      %v2297 = vsel %vm2295, %v2284, 0
      %v2300 = vsel %vm2295, %v2268, 0
      %v2303 = vsel %vm2295, %v2269, 0
      %v2306 = vsel %vm2295, %v2270, 0
      %v2309 = vsel %vm2295, %v2271, 0
      %v2312 = vsel %vm2295, %v2272, 0
      %v2315 = vsel %vm2295, %v2273, 0
      %v2318 = vsel %vm2295, %v2274, 0
      %v2321 = vsel %vm2295, %v2275, 0
      %v2324 = vsel %vm2295, %v2276, 0
      %v2327 = vsel %vm2295, %v2277, 0
      %v2330 = vsel %vm2295, %v2278, 0
      %v2333 = vsel %vm2295, %v2279, 0
      %v2336 = vsel %vm2295, %v2280, 0
      %v2339 = vsel %vm2295, %v2281, 0
      %v2342 = vsel %vm2295, %v2282, 0
      %v2345 = vsel %vm2295, %v2283, 0
      %2347 = vmatprep.subr.mxu0 0.0
      %2348 = vmatpush1.xpose.msra.mxu0 %v2300
      %2349 = vmatprep.subr.mxu0 0.0
      %2350 = vmatpush1.xpose.msra.mxu0 %v2303
      %2351 = vmatprep.subr.mxu0 0.0
      %2352 = vmatpush1.xpose.msra.mxu0 %v2306
      %2353 = vmatprep.subr.mxu0 0.0
      %2354 = vmatpush1.xpose.msra.mxu0 %v2309
      %2355 = vmatprep.subr.mxu0 0.0
      %2356 = vmatpush1.xpose.msra.mxu0 %v2312
      %2357 = vmatprep.subr.mxu0 0.0
      %2358 = vmatpush1.xpose.msra.mxu0 %v2315
      %2359 = vmatprep.subr.mxu0 0.0
      %2360 = vmatpush1.xpose.msra.mxu0 %v2318
      %2361 = vmatprep.subr.mxu0 0.0
      %2362 = vmatpush1.xpose.msra.mxu0 %v2321
      %2363 = vmatprep.subr.mxu0 0.0
      %2364 = vmatpush1.xpose.msra.mxu0 %v2324
      %2365 = vmatprep.subr.mxu0 0.0
      %2366 = vmatpush1.xpose.msra.mxu0 %v2327
      %2367 = vmatprep.subr.mxu0 0.0
      %2368 = vmatpush1.xpose.msra.mxu0 %v2330
      %2369 = vmatprep.subr.mxu0 0.0
      %2370 = vmatpush1.xpose.msra.mxu0 %v2333
      %2371 = vmatprep.subr.mxu0 0.0
      %2372 = vmatpush1.xpose.msra.mxu0 %v2336
      %2373 = vmatprep.subr.mxu0 0.0
      %2374 = vmatpush1.xpose.msra.mxu0 %v2339
      %2375 = vmatprep.subr.mxu0 0.0
      %2376 = vmatpush1.xpose.msra.mxu0 %v2342
      %2377 = vmatprep.subr.mxu0 0.0
      %2378 = vmatpush1.xpose.msra.mxu0 %v2345
      %2379 = vmatprep.subr.mxu0 0.0
      %2380 = vmatpush1.xpose.msra.mxu0 0.0
      %2381 = vmatprep.subr.mxu0 0.0
      %2382 = vmatpush1.xpose.msra.mxu0 0.0
      %2383 = vmatprep.subr.mxu0 0.0
      %2384 = vmatpush1.xpose.msra.mxu0 0.0
      %2385 = vmatprep.subr.mxu0 0.0
      %2386 = vmatpush1.xpose.msra.mxu0 0.0
      %2387 = vmatprep.subr.mxu0 0.0
      %2388 = vmatpush1.xpose.msra.mxu0 0.0
      %2389 = vmatprep.subr.mxu0 0.0
      %2390 = vmatpush1.xpose.msra.mxu0 0.0
      %2391 = vmatprep.subr.mxu0 0.0
      %2392 = vmatpush1.xpose.msra.mxu0 0.0
      %2393 = vmatprep.subr.mxu0 0.0
      %2394 = vmatpush1.xpose.msra.mxu0 0.0
      %2395 = vmatprep.subr.mxu0 0.0
      %2396 = vmatpush1.xpose.msra.mxu0 0.0
      %2397 = vmatprep.subr.mxu0 0.0
      %2398 = vmatpush1.xpose.msra.mxu0 0.0
      %2399 = vmatprep.subr.mxu0 0.0
      %2400 = vmatpush1.xpose.msra.mxu0 0.0
      %2401 = vmatprep.subr.mxu0 0.0
      %2402 = vmatpush1.xpose.msra.mxu0 0.0
      %2403 = vmatprep.subr.mxu0 0.0
      %2404 = vmatpush1.xpose.msra.mxu0 0.0
      %2405 = vmatprep.subr.mxu0 0.0
      %2406 = vmatpush1.xpose.msra.mxu0 0.0
      %2407 = vmatprep.subr.mxu0 0.0
      %2408 = vmatpush1.xpose.msra.mxu0 0.0
      %2409 = vmatprep.subr.mxu0 0.0
      %2410 = vmatpush1.xpose.msra.mxu0 0.0
      %2411 = vmatprep.mubr.f32.mxu0 0.0
      %2412 = vmatmul.mubr.f32.gmra.mrb[0].mxu0 %v2297
      %v2413 = vpop.f32.mrb[0].mxu0
      %v2414 = vadd.f32 %v2294, %v2413
      %v2415 = vpop.f32.mrb[0].mxu0
      %2416 = vdwg.mxu0
      %2417 = vst [vmem:[#allocation9] sm:$0x1] %v2414
    $region81: #{tpu_custom_call.1} parent=1 // pred_fallthru
      _
    // Predicated region
    $region82: #{tpu_custom_call.1} parent=1 // pred_check
      _
    $region83: #{tpu_custom_call.1} parent=1 // pred_check_branch
      %2419 = sbr.rel (0) target = $region85
    $region84: #{tpu_custom_call.1} parent=1 // pred_region
      %s2421 = ssub.s32 16, 16
      %2422 = vsyncadd [#allocation6], %s2421
      %s2424 = sshll.u32 [#allocation9], 4
      %s2425 = int_to_ptr.vmem [resolvable:$true] %s2424
      %2427 = dma.vmem_to_hbm [thread:$0]  %s2425, 16, %s15, [#allocation6]
    $region85: #{tpu_custom_call.1} parent=1 // pred_fallthru
      _
    // Predicated region
    $region86: #{tpu_custom_call.1} parent=1 // pred_check
      _
    $region87: #{tpu_custom_call.1} parent=1 // pred_check_branch
      %2429 = sbr.rel (0) target = $region89
    $region88: #{tpu_custom_call.1} parent=1 // pred_region
      %2430 = dma.done [#allocation6], 16
    $region89: #{tpu_custom_call.1} parent=1 // pred_fallthru
      _
    %2431 = vsyncpa [#allocation5], 1
    %2432 = vsyncpa [#allocation8], 1
    %2433 = vsyncpa [#allocation6], 1

</llo_original>
